<compile_context>
chip_gen: v6e
topology: v6e:2x2x1
jax: 0.10.0
libtpu: 0.0.40
codegen_flags: <defaults>
</compile_context>

<pallas_src>
import math

import jax
import jax.numpy as jnp
from jax.experimental import pallas as pl
from jax.experimental.pallas import tpu as pltpu  # noqa: F401  (TPU backend)

# ---------------- configuration (small, consistent with the module) ----------
B = 2            # batch
N = 8            # retrieved-token sequence length
HW = 1           # spatial tokens per entry (module only type-checks for hw==1)
VOCAB = 64       # input_vocab_size
IN_CH = 32       # in_channels (token-embedding dim == Conv1d channels)
HEADS = 4        # n_heads
DHEAD = 8        # d_head
INNER = HEADS * DHEAD        # 32  (transformer model dim)
DIM = INNER
FF_INNER = 4 * DIM           # 128 (FeedForward mult=4, GEGLU)
OUT_CH = IN_CH               # out_channels defaults to in_channels
SEQ = N * HW                 # tokens per batch element
BN = B * SEQ                 # 16 rows after folding batch into sublanes
HBN = HEADS * BN             # 64 stacked-head rows
SCALE = DHEAD ** (-0.5)
EPS = 1e-5
NEG = -1e30

assert SEQ & (SEQ - 1) == 0, "in-kernel block-diag mask uses the power-of-two xor trick"

# ---- packed bf16 weight-slab layout (row offsets, 256 lanes wide) -----------
W_LANES = 256
R_EMB, R_WPI = 0, 64          # emb (64,32), proj_in (32,32)
R_QKV1, R_WO1 = 96, 128       # fused qkv1 (32,96), wo1 (32,32)
R_QKV2, R_WO2 = 160, 192      # fused qkv2 (32,96), wo2 (32,32)
R_WG, R_WF, R_WPO = 224, 256, 384   # wg (32,256), wf (128,32), proj_out (32,32)
W_ROWS = 416

# ---- packed f32 gamma/beta/bias slab layout (one vector per row) ------------
V_LANES = 256
(V_G0, V_B0, V_BPI, V_G1, V_B1, V_BO1, V_G2, V_B2, V_BO2,
 V_G3, V_B3, V_BG, V_BF, V_BPO) = range(14)
V_ROWS = 16

# TODO(synk): causal=True (triangular mask) and positional_encodings=True are
#             not implemented; the module defaults (False) are what is done.
#             nn.Dropout(p=0) / torch checkpoint are forward no-ops.


# ---------------- kernel-side helpers -----------------------------------------
def _mm(a, b):
    """a @ b on the MXU (operands already bf16), f32 accumulation."""
    return jax.lax.dot_general(a, b, (((1,), (0,)), ((), ())),
                               preferred_element_type=jnp.float32)


def _mm_t(a, b):
    """a @ b.T on the MXU (operands already bf16), f32 accumulation."""
    return jax.lax.dot_general(a, b, (((1,), (1,)), ((), ())),
                               preferred_element_type=jnp.float32)


def _layernorm(x, gamma, beta):
    # two-pass statistics (matches the reference; numerically safer than E[x^2]-mu^2)
    mu = jnp.mean(x, axis=-1, keepdims=True)
    xc = x - mu
    var = jnp.mean(xc * xc, axis=-1, keepdims=True)
    return xc * jax.lax.rsqrt(var + EPS) * gamma + beta


def _erf_approx(x):
    # Abramowitz & Stegun 7.1.26 polynomial erf (|err| <= 1.5e-7); only uses
    # exp / mul / add / div / where, all of which lower cleanly in Mosaic.
    ax = jnp.abs(x)
    t = 1.0 / (1.0 + 0.3275911 * ax)
    poly = ((((1.061405429 * t - 1.453152027) * t + 1.421413741) * t
             - 0.284496736) * t + 0.254829592) * t
    y = 1.0 - poly * jnp.exp(-ax * ax)
    return jnp.where(x >= 0.0, y, -y)


def _gelu_kernel(x):
    # exact (erf-based) GELU, F.gelu default, via the polynomial erf above
    return 0.5 * x * (1.0 + _erf_approx(x * (1.0 / math.sqrt(2.0))))


def _gelu_exact(x):
    # host-side reference: true erf-based GELU
    return 0.5 * x * (1.0 + jax.lax.erf(x * (1.0 / math.sqrt(2.0))))


def _mha(h, wqkv, wo, bo, blk_ok):
    """Fused multi-head self-attention on a (BN, DIM) f32 slab.

    One QKV matmul; heads stacked along sublanes -> one (HBN, HBN) masked score
    matmul, one softmax, one attn@V, one output projection.  Batch/head
    separation is the (head,batch)-block-diagonal boolean mask `blk_ok`.
    """
    bf16 = jnp.bfloat16
    qkv = _mm(h.astype(bf16), wqkv)                         # (BN, 3*INNER) f32
    qkv_b = qkv.astype(bf16)                                # single hoisted cast

    # stack head slices along sublanes: (HEADS*BN, DHEAD)
    q_s = jnp.concatenate(
        [qkv_b[:, hh * DHEAD:(hh + 1) * DHEAD] for hh in range(HEADS)], axis=0)
    k_s = jnp.concatenate(
        [qkv_b[:, INNER + hh * DHEAD:INNER + (hh + 1) * DHEAD]
         for hh in range(HEADS)], axis=0)
    v_s = jnp.concatenate(
        [qkv_b[:, 2 * INNER + hh * DHEAD:2 * INNER + (hh + 1) * DHEAD]
         for hh in range(HEADS)], axis=0)

    # one (64,64) score matmul + block-diagonal mask + one exact softmax
    sim = jnp.where(blk_ok, _mm_t(q_s, k_s) * SCALE, NEG)
    m = jnp.max(sim, axis=-1, keepdims=True)
    p = jnp.exp(sim - m)
    attn = (p / jnp.sum(p, axis=-1, keepdims=True)).astype(bf16)

    out_s = _mm(attn, v_s)                                  # (HBN, DHEAD) f32
    # un-stack heads back onto lanes -> (BN, INNER), then one output projection
    out = jnp.concatenate(
        [out_s[hh * BN:(hh + 1) * BN, :] for hh in range(HEADS)], axis=1)
    return _mm(out.astype(bf16), wo) + bo


# ---------------- the fused kernel --------------------------------------------
def _wrapper_kernel(tok_ref, w_ref, v_ref, o_ref):
    bf16 = jnp.bfloat16

    # ---- static slices of the two packed parameter slabs (zero-cost views) --
    emb_w = w_ref[R_EMB:R_EMB + VOCAB, :IN_CH]
    wpi = w_ref[R_WPI:R_WPI + IN_CH, :DIM]
    wqkv1 = w_ref[R_QKV1:R_QKV1 + DIM, :3 * INNER]
    wo1 = w_ref[R_WO1:R_WO1 + INNER, :DIM]
    wqkv2 = w_ref[R_QKV2:R_QKV2 + DIM, :3 * INNER]
    wo2 = w_ref[R_WO2:R_WO2 + INNER, :DIM]
    wg = w_ref[R_WG:R_WG + DIM, :2 * FF_INNER]
    wf = w_ref[R_WF:R_WF + FF_INNER, :DIM]
    wpo = w_ref[R_WPO:R_WPO + DIM, :OUT_CH]

    g0 = v_ref[V_G0:V_G0 + 1, :IN_CH]
    b0 = v_ref[V_B0:V_B0 + 1, :IN_CH]
    bpi = v_ref[V_BPI:V_BPI + 1, :DIM]
    g1 = v_ref[V_G1:V_G1 + 1, :DIM]
    b1 = v_ref[V_B1:V_B1 + 1, :DIM]
    bo1 = v_ref[V_BO1:V_BO1 + 1, :DIM]
    g2 = v_ref[V_G2:V_G2 + 1, :DIM]
    b2 = v_ref[V_B2:V_B2 + 1, :DIM]
    bo2 = v_ref[V_BO2:V_BO2 + 1, :DIM]
    g3 = v_ref[V_G3:V_G3 + 1, :DIM]
    b3 = v_ref[V_B3:V_B3 + 1, :DIM]
    bg = v_ref[V_BG:V_BG + 1, :2 * FF_INNER]
    bff = v_ref[V_BF:V_BF + 1, :DIM]
    bpo = v_ref[V_BPO:V_BPO + 1, :OUT_CH]

    # ---- (head,batch)-block-diagonal attention mask, generated in-kernel ----
    # rows are ordered [head][batch][token]; same (head,batch) block of size SEQ
    # (power of two, aligned) <=> (ri ^ ci) < SEQ.
    ri = jax.lax.broadcasted_iota(jnp.int32, (HBN, HBN), 0)
    ci = jax.lax.broadcasted_iota(jnp.int32, (HBN, HBN), 1)
    blk_ok = (ri ^ ci) < SEQ

    # ---- tok_emb: gather-free embedding lookup via one-hot matmul -----------
    tok = tok_ref[...]                                      # (BN, 1) int32
    vocab_ids = jax.lax.broadcasted_iota(jnp.int32, (BN, VOCAB), 1)
    onehot = jnp.where(tok == vocab_ids, 1.0, 0.0).astype(bf16)
    x = _mm(onehot, emb_w)                                  # (BN, IN_CH) f32

    # ---- continuous LayerNorm + proj_in (1x1 Conv1d == dense) ---------------
    x = _mm(_layernorm(x, g0, b0).astype(bf16), wpi) + bpi

    # ---- BasicTransformerBlock: attn1, attn2 (self), GEGLU feed-forward -----
    x = x + _mha(_layernorm(x, g1, b1), wqkv1, wo1, bo1, blk_ok)
    x = x + _mha(_layernorm(x, g2, b2), wqkv2, wo2, bo2, blk_ok)
    ff = _mm(_layernorm(x, g3, b3).astype(bf16), wg) + bg   # (BN, 2*FF_INNER)
    a, gate = ff[:, :FF_INNER], ff[:, FF_INNER:]
    x = x + (_mm((a * _gelu_kernel(gate)).astype(bf16), wf) + bff)

    # ---- proj_out (1x1 Conv1d == dense) --------------------------------------
    o_ref[...] = _mm(x.astype(bf16), wpo) + bpo


# ---------------- host-side one-time parameter packing -------------------------
def pack_params(p):
    """Pack all matmul weights into one bf16 slab and all gammas/betas/biases
    into one f32 slab.  Done ONCE, off the per-call path (no per-call XLA ops
    for casting / concatenation)."""
    bf = lambda w: w.astype(jnp.bfloat16)
    wqkv1 = jnp.concatenate([p["wq1"], p["wk1"], p["wv1"]], axis=1)
    wqkv2 = jnp.concatenate([p["wq2"], p["wk2"], p["wv2"]], axis=1)

    w_slab = jnp.zeros((W_ROWS, W_LANES), jnp.bfloat16)
    for row, w in ((R_EMB, p["emb"]), (R_WPI, p["w_pi"]),
                   (R_QKV1, wqkv1), (R_WO1, p["wo1"]),
                   (R_QKV2, wqkv2), (R_WO2, p["wo2"]),
                   (R_WG, p["wg"]), (R_WF, p["wf"]), (R_WPO, p["w_po"])):
        r, c = w.shape
        w_slab = w_slab.at[row:row + r, :c].set(bf(w))

    v_slab = jnp.zeros((V_ROWS, V_LANES), jnp.float32)
    for row, v in ((V_G0, p["g0"]), (V_B0, p["b0"]), (V_BPI, p["b_pi"]),
                   (V_G1, p["g1"]), (V_B1, p["b1"]), (V_BO1, p["bo1"]),
                   (V_G2, p["g2"]), (V_B2, p["b2"]), (V_BO2, p["bo2"]),
                   (V_G3, p["g3"]), (V_B3, p["b3"]), (V_BG, p["bg"]),
                   (V_BF, p["bf"]), (V_BPO, p["b_po"])):
        v_slab = v_slab.at[row:row + 1, :v.shape[1]].set(v)

    return {"w_slab": w_slab, "v_slab": v_slab}


# ---------------- host wrapper ------------------------------------------------
@jax.jit
def retrieval_token_transformer(tokens, packed):
    b, n, s = tokens.shape
    assert (b, n, s) == (B, N, HW), "kernel is specialized to the module's config"
    bn = b * n * s
    tok2d = tokens.reshape(bn, 1).astype(jnp.int32)
    # single-shot kernel: whole problem lives in VMEM; 3 input DMAs + 1 output.
    out = pl.pallas_call(
        _wrapper_kernel,
        out_shape=jax.ShapeDtypeStruct((bn, OUT_CH), jnp.float32),
    )(tok2d, packed["w_slab"], packed["v_slab"])
    return out.reshape(b, n, OUT_CH)


# ---------------- pure-JAX reference (module math, same bf16 MXU policy) ------
def _ref_dot(a, b):
    return jax.lax.dot_general(
        a.astype(jnp.bfloat16), b.astype(jnp.bfloat16),
        (((a.ndim - 1,), (0,)), ((), ())),
        preferred_element_type=jnp.float32)


@jax.jit
def reference_forward(tokens, p):
    bsz, n, s = tokens.shape

    def ln(y, g, bb):
        mu = jnp.mean(y, axis=-1, keepdims=True)
        var = jnp.mean((y - mu) ** 2, axis=-1, keepdims=True)
        return (y - mu) / jnp.sqrt(var + EPS) * g + bb

    def attn(h, wq, wk, wv, wo, bo):
        q, k, v = _ref_dot(h, wq), _ref_dot(h, wk), _ref_dot(h, wv)

        def split(t):
            return t.reshape(bsz, n * s, HEADS, DHEAD).transpose(0, 2, 1, 3)

        qh, kh, vh = split(q), split(k), split(v)
        sim = jnp.einsum("bhid,bhjd->bhij",
                         qh.astype(jnp.bfloat16), kh.astype(jnp.bfloat16),
                         preferred_element_type=jnp.float32) * SCALE
        a = jax.nn.softmax(sim, axis=-1)
        o = jnp.einsum("bhij,bhjd->bhid",
                       a.astype(jnp.bfloat16), vh.astype(jnp.bfloat16),
                       preferred_element_type=jnp.float32)
        o = o.transpose(0, 2, 1, 3).reshape(bsz, n * s, INNER)
        return _ref_dot(o, wo) + bo

    # tok_emb (rows rounded through bf16 to match the kernel's weight policy)
    emb = p["emb"].astype(jnp.bfloat16).astype(jnp.float32)
    x = emb[tokens.reshape(bsz, n * s)].reshape(bsz, n, s * IN_CH)

    x = ln(x, p["g0"], p["b0"])
    x = _ref_dot(x, p["w_pi"]) + p["b_pi"]

    x = x + attn(ln(x, p["g1"], p["b1"]),
                 p["wq1"], p["wk1"], p["wv1"], p["wo1"], p["bo1"])
    x = x + attn(ln(x, p["g2"], p["b2"]),
                 p["wq2"], p["wk2"], p["wv2"], p["wo2"], p["bo2"])
    h = ln(x, p["g3"], p["b3"])
    ff = _ref_dot(h, p["wg"]) + p["bg"]
    a, gate = ff[..., :FF_INNER], ff[..., FF_INNER:]
    x = x + _ref_dot(a * _gelu_exact(gate), p["wf"]) + p["bf"]
    return _ref_dot(x, p["w_po"]) + p["b_po"]


# ---------------- parameters ---------------------------------------------------
def make_params(key):
    ks = iter(jax.random.split(key, 32))

    def lin(fi, fo):
        return jax.random.normal(next(ks), (fi, fo), jnp.float32) / math.sqrt(fi)

    def bias(fo):
        return 0.02 * jax.random.normal(next(ks), (1, fo), jnp.float32)

    def gamma(d):
        return 1.0 + 0.1 * jax.random.normal(next(ks), (1, d), jnp.float32)

    def beta(d):
        return 0.05 * jax.random.normal(next(ks), (1, d), jnp.float32)

    return {
        # tok_emb
        "emb": jax.random.normal(next(ks), (VOCAB, IN_CH), jnp.float32),
        # continuous LayerNorm + proj_in (Conv1d k=1, stored pre-transposed [in, out])
        "g0": gamma(IN_CH), "b0": beta(IN_CH),
        "w_pi": lin(IN_CH, DIM), "b_pi": bias(DIM),
        # BasicTransformerBlock
        "g1": gamma(DIM), "b1": beta(DIM),
        "wq1": lin(DIM, INNER), "wk1": lin(DIM, INNER), "wv1": lin(DIM, INNER),
        "wo1": lin(INNER, DIM), "bo1": bias(DIM),
        "g2": gamma(DIM), "b2": beta(DIM),
        "wq2": lin(DIM, INNER), "wk2": lin(DIM, INNER), "wv2": lin(DIM, INNER),
        "wo2": lin(INNER, DIM), "bo2": bias(DIM),
        "g3": gamma(DIM), "b3": beta(DIM),
        "wg": lin(DIM, 2 * FF_INNER), "bg": bias(2 * FF_INNER),
        "wf": lin(FF_INNER, DIM), "bf": bias(DIM),
        # proj_out (Conv1d k=1)
        "w_po": lin(DIM, OUT_CH), "b_po": bias(OUT_CH),
    }


if __name__ == "__main__":
    key = jax.random.PRNGKey(0)
    k_tok, k_par = jax.random.split(key)
    tokens = jax.random.randint(k_tok, (B, N, HW), 0, VOCAB, dtype=jnp.int32)
    params = make_params(k_par)
    packed = pack_params(params)          # one-time packing, off the call path

    out = jax.block_until_ready(retrieval_token_transformer(tokens, packed))
    ref = jax.block_until_ready(reference_forward(tokens, params))

    assert out.shape == (B, N, OUT_CH)
    max_err = float(jnp.max(jnp.abs(out - ref)))
    assert jnp.allclose(out, ref, rtol=5e-3, atol=5e-3), max_err
    print("KERNEL_OK")
</pallas_src>

<mosaic_0001>
module attributes {stable_mosaic.version = 11 : i64} {
  func.func @_wrapper_kernel(%arg0: memref<16x1xi32, #tpu.memory_space<vmem>>, %arg1: memref<416x256xbf16, #tpu.memory_space<vmem>>, %arg2: memref<16x256xf32, #tpu.memory_space<vmem>>, %arg3: memref<16x32xf32, #tpu.memory_space<vmem>>) attributes {dimension_semantics = [], scalar_prefetch = 0 : i64, scratch_operands = 0 : i64, tpu.core_type = #tpu.core_type<tc>} {
    %c0 = arith.constant 0 : index
    %c0_0 = arith.constant 0 : index
    %0 = vector.load %arg1[%c0, %c0_0] : memref<416x256xbf16, #tpu.memory_space<vmem>>, vector<64x32xbf16>
    %c64 = arith.constant 64 : index
    %c0_1 = arith.constant 0 : index
    %1 = vector.load %arg1[%c64, %c0_1] : memref<416x256xbf16, #tpu.memory_space<vmem>>, vector<32x32xbf16>
    %c96 = arith.constant 96 : index
    %c0_2 = arith.constant 0 : index
    %2 = vector.load %arg1[%c96, %c0_2] : memref<416x256xbf16, #tpu.memory_space<vmem>>, vector<32x96xbf16>
    %c128 = arith.constant 128 : index
    %c0_3 = arith.constant 0 : index
    %3 = vector.load %arg1[%c128, %c0_3] : memref<416x256xbf16, #tpu.memory_space<vmem>>, vector<32x32xbf16>
    %c160 = arith.constant 160 : index
    %c0_4 = arith.constant 0 : index
    %4 = vector.load %arg1[%c160, %c0_4] : memref<416x256xbf16, #tpu.memory_space<vmem>>, vector<32x96xbf16>
    %c192 = arith.constant 192 : index
    %c0_5 = arith.constant 0 : index
    %5 = vector.load %arg1[%c192, %c0_5] : memref<416x256xbf16, #tpu.memory_space<vmem>>, vector<32x32xbf16>
    %c224 = arith.constant 224 : index
    %c0_6 = arith.constant 0 : index
    %6 = vector.load %arg1[%c224, %c0_6] : memref<416x256xbf16, #tpu.memory_space<vmem>>, vector<32x256xbf16>
    %c256 = arith.constant 256 : index
    %c0_7 = arith.constant 0 : index
    %7 = vector.load %arg1[%c256, %c0_7] : memref<416x256xbf16, #tpu.memory_space<vmem>>, vector<128x32xbf16>
    %c384 = arith.constant 384 : index
    %c0_8 = arith.constant 0 : index
    %8 = vector.load %arg1[%c384, %c0_8] : memref<416x256xbf16, #tpu.memory_space<vmem>>, vector<32x32xbf16>
    %c0_9 = arith.constant 0 : index
    %c0_10 = arith.constant 0 : index
    %9 = vector.load %arg2[%c0_9, %c0_10] : memref<16x256xf32, #tpu.memory_space<vmem>>, vector<1x32xf32>
    %c1 = arith.constant 1 : index
    %c0_11 = arith.constant 0 : index
    %10 = vector.load %arg2[%c1, %c0_11] : memref<16x256xf32, #tpu.memory_space<vmem>>, vector<1x32xf32>
    %c2 = arith.constant 2 : index
    %c0_12 = arith.constant 0 : index
    %11 = vector.load %arg2[%c2, %c0_12] : memref<16x256xf32, #tpu.memory_space<vmem>>, vector<1x32xf32>
    %c3 = arith.constant 3 : index
    %c0_13 = arith.constant 0 : index
    %12 = vector.load %arg2[%c3, %c0_13] : memref<16x256xf32, #tpu.memory_space<vmem>>, vector<1x32xf32>
    %c4 = arith.constant 4 : index
    %c0_14 = arith.constant 0 : index
    %13 = vector.load %arg2[%c4, %c0_14] : memref<16x256xf32, #tpu.memory_space<vmem>>, vector<1x32xf32>
    %c5 = arith.constant 5 : index
    %c0_15 = arith.constant 0 : index
    %14 = vector.load %arg2[%c5, %c0_15] : memref<16x256xf32, #tpu.memory_space<vmem>>, vector<1x32xf32>
    %c6 = arith.constant 6 : index
    %c0_16 = arith.constant 0 : index
    %15 = vector.load %arg2[%c6, %c0_16] : memref<16x256xf32, #tpu.memory_space<vmem>>, vector<1x32xf32>
    %c7 = arith.constant 7 : index
    %c0_17 = arith.constant 0 : index
    %16 = vector.load %arg2[%c7, %c0_17] : memref<16x256xf32, #tpu.memory_space<vmem>>, vector<1x32xf32>
    %c8 = arith.constant 8 : index
    %c0_18 = arith.constant 0 : index
    %17 = vector.load %arg2[%c8, %c0_18] : memref<16x256xf32, #tpu.memory_space<vmem>>, vector<1x32xf32>
    %c9 = arith.constant 9 : index
    %c0_19 = arith.constant 0 : index
    %18 = vector.load %arg2[%c9, %c0_19] : memref<16x256xf32, #tpu.memory_space<vmem>>, vector<1x32xf32>
    %c10 = arith.constant 10 : index
    %c0_20 = arith.constant 0 : index
    %19 = vector.load %arg2[%c10, %c0_20] : memref<16x256xf32, #tpu.memory_space<vmem>>, vector<1x32xf32>
    %c11 = arith.constant 11 : index
    %c0_21 = arith.constant 0 : index
    %20 = vector.load %arg2[%c11, %c0_21] : memref<16x256xf32, #tpu.memory_space<vmem>>, vector<1x256xf32>
    %c12 = arith.constant 12 : index
    %c0_22 = arith.constant 0 : index
    %21 = vector.load %arg2[%c12, %c0_22] : memref<16x256xf32, #tpu.memory_space<vmem>>, vector<1x32xf32>
    %c13 = arith.constant 13 : index
    %c0_23 = arith.constant 0 : index
    %22 = vector.load %arg2[%c13, %c0_23] : memref<16x256xf32, #tpu.memory_space<vmem>>, vector<1x32xf32>
    %23 = tpu.iota {dimensions = array<i32: 0>} : vector<64x64xi32>
    %24 = tpu.iota {dimensions = array<i32: 1>} : vector<64x64xi32>
    %25 = arith.xori %23, %24 : vector<64x64xi32>
    %c8_i32 = arith.constant 8 : i32
    %26 = vector.broadcast %c8_i32 : i32 to vector<64x64xi32>
    %27 = arith.cmpi slt, %25, %26 : vector<64x64xi32>
    %c0_24 = arith.constant 0 : index
    %c0_25 = arith.constant 0 : index
    %28 = vector.load %arg0[%c0_24, %c0_25] : memref<16x1xi32, #tpu.memory_space<vmem>>, vector<16x1xi32>
    %29 = tpu.iota {dimensions = array<i32: 1>} : vector<16x64xi32>
    %30 = vector.broadcast %28 : vector<16x1xi32> to vector<16x64xi32>
    %31 = arith.cmpi eq, %30, %29 : vector<16x64xi32>
    %cst = arith.constant 1.000000e+00 : f32
    %cst_26 = arith.constant 0.000000e+00 : f32
    %32 = vector.broadcast %cst : f32 to vector<16x64xf32>
    %33 = vector.broadcast %cst_26 : f32 to vector<16x64xf32>
    %34 = arith.select %31, %32, %33 : vector<16x64xi1>, vector<16x64xf32>
    %35 = arith.truncf %34 : vector<16x64xf32> to vector<16x64xbf16>
    %cst_27 = arith.constant dense<0.000000e+00> : vector<16x32xf32>
    %36 = tpu.matmul %35, %0, %cst_27 {dimension_numbers = #tpu.dot_dimension_numbers<[1], [0], [0], [1], [0, 0, 1, 1], [], []>} : vector<16x64xbf16>, vector<64x32xbf16>, vector<16x32xf32> -> vector<16x32xf32>
    %cst_28 = arith.constant dense<0.000000e+00> : vector<16xf32>
    %37 = vector.multi_reduction <add>, %36, %cst_28 [1] : vector<16x32xf32> to vector<16xf32>
    %38 = vector.shape_cast %37 : vector<16xf32> to vector<16x1xf32>
    %cst_29 = arith.constant 3.200000e+01 : f32
    %39 = vector.broadcast %cst_29 : f32 to vector<16x1xf32>
    %40 = arith.divf %38, %39 : vector<16x1xf32>
    %41 = vector.broadcast %40 : vector<16x1xf32> to vector<16x32xf32>
    %42 = arith.subf %36, %41 : vector<16x32xf32>
    %43 = arith.mulf %42, %42 : vector<16x32xf32>
    %cst_30 = arith.constant dense<0.000000e+00> : vector<16xf32>
    %44 = vector.multi_reduction <add>, %43, %cst_30 [1] : vector<16x32xf32> to vector<16xf32>
    %45 = vector.shape_cast %44 : vector<16xf32> to vector<16x1xf32>
    %cst_31 = arith.constant 3.200000e+01 : f32
    %46 = vector.broadcast %cst_31 : f32 to vector<16x1xf32>
    %47 = arith.divf %45, %46 : vector<16x1xf32>
    %cst_32 = arith.constant 9.99999974E-6 : f32
    %48 = vector.broadcast %cst_32 : f32 to vector<16x1xf32>
    %49 = arith.addf %47, %48 : vector<16x1xf32>
    %50 = math.rsqrt %49 : vector<16x1xf32>
    %51 = vector.broadcast %50 : vector<16x1xf32> to vector<16x32xf32>
    %52 = arith.mulf %42, %51 : vector<16x32xf32>
    %53 = vector.broadcast %9 : vector<1x32xf32> to vector<16x32xf32>
    %54 = arith.mulf %52, %53 : vector<16x32xf32>
    %55 = vector.broadcast %10 : vector<1x32xf32> to vector<16x32xf32>
    %56 = arith.addf %54, %55 : vector<16x32xf32>
    %57 = arith.truncf %56 : vector<16x32xf32> to vector<16x32xbf16>
    %cst_33 = arith.constant dense<0.000000e+00> : vector<16x32xf32>
    %58 = tpu.matmul %57, %1, %cst_33 {dimension_numbers = #tpu.dot_dimension_numbers<[1], [0], [0], [1], [0, 0, 1, 1], [], []>} : vector<16x32xbf16>, vector<32x32xbf16>, vector<16x32xf32> -> vector<16x32xf32>
    %59 = vector.broadcast %11 : vector<1x32xf32> to vector<16x32xf32>
    %60 = arith.addf %58, %59 : vector<16x32xf32>
    %cst_34 = arith.constant dense<0.000000e+00> : vector<16xf32>
    %61 = vector.multi_reduction <add>, %60, %cst_34 [1] : vector<16x32xf32> to vector<16xf32>
    %62 = vector.shape_cast %61 : vector<16xf32> to vector<16x1xf32>
    %cst_35 = arith.constant 3.200000e+01 : f32
    %63 = vector.broadcast %cst_35 : f32 to vector<16x1xf32>
    %64 = arith.divf %62, %63 : vector<16x1xf32>
    %65 = vector.broadcast %64 : vector<16x1xf32> to vector<16x32xf32>
    %66 = arith.subf %60, %65 : vector<16x32xf32>
    %67 = arith.mulf %66, %66 : vector<16x32xf32>
    %cst_36 = arith.constant dense<0.000000e+00> : vector<16xf32>
    %68 = vector.multi_reduction <add>, %67, %cst_36 [1] : vector<16x32xf32> to vector<16xf32>
    %69 = vector.shape_cast %68 : vector<16xf32> to vector<16x1xf32>
    %cst_37 = arith.constant 3.200000e+01 : f32
    %70 = vector.broadcast %cst_37 : f32 to vector<16x1xf32>
    %71 = arith.divf %69, %70 : vector<16x1xf32>
    %cst_38 = arith.constant 9.99999974E-6 : f32
    %72 = vector.broadcast %cst_38 : f32 to vector<16x1xf32>
    %73 = arith.addf %71, %72 : vector<16x1xf32>
    %74 = math.rsqrt %73 : vector<16x1xf32>
    %75 = vector.broadcast %74 : vector<16x1xf32> to vector<16x32xf32>
    %76 = arith.mulf %66, %75 : vector<16x32xf32>
    %77 = vector.broadcast %12 : vector<1x32xf32> to vector<16x32xf32>
    %78 = arith.mulf %76, %77 : vector<16x32xf32>
    %79 = vector.broadcast %13 : vector<1x32xf32> to vector<16x32xf32>
    %80 = arith.addf %78, %79 : vector<16x32xf32>
    %81 = arith.truncf %80 : vector<16x32xf32> to vector<16x32xbf16>
    %cst_39 = arith.constant dense<0.000000e+00> : vector<16x96xf32>
    %82 = tpu.matmul %81, %2, %cst_39 {dimension_numbers = #tpu.dot_dimension_numbers<[1], [0], [0], [1], [0, 0, 1, 1], [], []>} : vector<16x32xbf16>, vector<32x96xbf16>, vector<16x96xf32> -> vector<16x96xf32>
    %83 = arith.truncf %82 : vector<16x96xf32> to vector<16x96xbf16>
    %84 = vector.extract_strided_slice %83 {offsets = [0, 0], sizes = [16, 8], strides = [1, 1]} : vector<16x96xbf16> to vector<16x8xbf16>
    %85 = vector.extract_strided_slice %83 {offsets = [0, 8], sizes = [16, 8], strides = [1, 1]} : vector<16x96xbf16> to vector<16x8xbf16>
    %86 = vector.extract_strided_slice %83 {offsets = [0, 16], sizes = [16, 8], strides = [1, 1]} : vector<16x96xbf16> to vector<16x8xbf16>
    %87 = vector.extract_strided_slice %83 {offsets = [0, 24], sizes = [16, 8], strides = [1, 1]} : vector<16x96xbf16> to vector<16x8xbf16>
    %88 = tpu.concatenate %84, %85, %86, %87 in 0 : vector<16x8xbf16>, vector<16x8xbf16>, vector<16x8xbf16>, vector<16x8xbf16> -> vector<64x8xbf16>
    %89 = vector.extract_strided_slice %83 {offsets = [0, 32], sizes = [16, 8], strides = [1, 1]} : vector<16x96xbf16> to vector<16x8xbf16>
    %90 = vector.extract_strided_slice %83 {offsets = [0, 40], sizes = [16, 8], strides = [1, 1]} : vector<16x96xbf16> to vector<16x8xbf16>
    %91 = vector.extract_strided_slice %83 {offsets = [0, 48], sizes = [16, 8], strides = [1, 1]} : vector<16x96xbf16> to vector<16x8xbf16>
    %92 = vector.extract_strided_slice %83 {offsets = [0, 56], sizes = [16, 8], strides = [1, 1]} : vector<16x96xbf16> to vector<16x8xbf16>
    %93 = tpu.concatenate %89, %90, %91, %92 in 0 : vector<16x8xbf16>, vector<16x8xbf16>, vector<16x8xbf16>, vector<16x8xbf16> -> vector<64x8xbf16>
    %94 = vector.extract_strided_slice %83 {offsets = [0, 64], sizes = [16, 8], strides = [1, 1]} : vector<16x96xbf16> to vector<16x8xbf16>
    %95 = vector.extract_strided_slice %83 {offsets = [0, 72], sizes = [16, 8], strides = [1, 1]} : vector<16x96xbf16> to vector<16x8xbf16>
    %96 = vector.extract_strided_slice %83 {offsets = [0, 80], sizes = [16, 8], strides = [1, 1]} : vector<16x96xbf16> to vector<16x8xbf16>
    %97 = vector.extract_strided_slice %83 {offsets = [0, 88], sizes = [16, 8], strides = [1, 1]} : vector<16x96xbf16> to vector<16x8xbf16>
    %98 = tpu.concatenate %94, %95, %96, %97 in 0 : vector<16x8xbf16>, vector<16x8xbf16>, vector<16x8xbf16>, vector<16x8xbf16> -> vector<64x8xbf16>
    %cst_40 = arith.constant dense<0.000000e+00> : vector<64x64xf32>
    %99 = tpu.matmul %88, %93, %cst_40 {dimension_numbers = #tpu.dot_dimension_numbers<[1], [1], [0], [0], [0, 0, 1, 0], [], []>} : vector<64x8xbf16>, vector<64x8xbf16>, vector<64x64xf32> -> vector<64x64xf32>
    %cst_41 = arith.constant 0.353553385 : f32
    %100 = vector.broadcast %cst_41 : f32 to vector<64x64xf32>
    %101 = arith.mulf %99, %100 : vector<64x64xf32>
    %cst_42 = arith.constant -1.000000e+30 : f32
    %102 = vector.broadcast %cst_42 : f32 to vector<64x64xf32>
    %103 = arith.select %27, %101, %102 : vector<64x64xi1>, vector<64x64xf32>
    %cst_43 = arith.constant dense<0xFF800000> : vector<64xf32>
    %104 = vector.multi_reduction <maximumf>, %103, %cst_43 [1] : vector<64x64xf32> to vector<64xf32>
    %105 = vector.shape_cast %104 : vector<64xf32> to vector<64x1xf32>
    %106 = vector.broadcast %105 : vector<64x1xf32> to vector<64x64xf32>
    %107 = arith.subf %103, %106 : vector<64x64xf32>
    %108 = math.exp %107 : vector<64x64xf32>
    %cst_44 = arith.constant dense<0.000000e+00> : vector<64xf32>
    %109 = vector.multi_reduction <add>, %108, %cst_44 [1] : vector<64x64xf32> to vector<64xf32>
    %110 = vector.shape_cast %109 : vector<64xf32> to vector<64x1xf32>
    %111 = vector.broadcast %110 : vector<64x1xf32> to vector<64x64xf32>
    %112 = arith.divf %108, %111 : vector<64x64xf32>
    %113 = arith.truncf %112 : vector<64x64xf32> to vector<64x64xbf16>
    %cst_45 = arith.constant dense<0.000000e+00> : vector<64x8xf32>
    %114 = tpu.matmul %113, %98, %cst_45 {dimension_numbers = #tpu.dot_dimension_numbers<[1], [0], [0], [1], [0, 0, 1, 1], [], []>} : vector<64x64xbf16>, vector<64x8xbf16>, vector<64x8xf32> -> vector<64x8xf32>
    %115 = vector.extract_strided_slice %114 {offsets = [0, 0], sizes = [16, 8], strides = [1, 1]} : vector<64x8xf32> to vector<16x8xf32>
    %116 = vector.extract_strided_slice %114 {offsets = [16, 0], sizes = [16, 8], strides = [1, 1]} : vector<64x8xf32> to vector<16x8xf32>
    %117 = vector.extract_strided_slice %114 {offsets = [32, 0], sizes = [16, 8], strides = [1, 1]} : vector<64x8xf32> to vector<16x8xf32>
    %118 = vector.extract_strided_slice %114 {offsets = [48, 0], sizes = [16, 8], strides = [1, 1]} : vector<64x8xf32> to vector<16x8xf32>
    %119 = tpu.concatenate %115, %116, %117, %118 in 1 : vector<16x8xf32>, vector<16x8xf32>, vector<16x8xf32>, vector<16x8xf32> -> vector<16x32xf32>
    %120 = arith.truncf %119 : vector<16x32xf32> to vector<16x32xbf16>
    %cst_46 = arith.constant dense<0.000000e+00> : vector<16x32xf32>
    %121 = tpu.matmul %120, %3, %cst_46 {dimension_numbers = #tpu.dot_dimension_numbers<[1], [0], [0], [1], [0, 0, 1, 1], [], []>} : vector<16x32xbf16>, vector<32x32xbf16>, vector<16x32xf32> -> vector<16x32xf32>
    %122 = vector.broadcast %14 : vector<1x32xf32> to vector<16x32xf32>
    %123 = arith.addf %121, %122 : vector<16x32xf32>
    %124 = arith.addf %60, %123 : vector<16x32xf32>
    %cst_47 = arith.constant dense<0.000000e+00> : vector<16xf32>
    %125 = vector.multi_reduction <add>, %124, %cst_47 [1] : vector<16x32xf32> to vector<16xf32>
    %126 = vector.shape_cast %125 : vector<16xf32> to vector<16x1xf32>
    %cst_48 = arith.constant 3.200000e+01 : f32
    %127 = vector.broadcast %cst_48 : f32 to vector<16x1xf32>
    %128 = arith.divf %126, %127 : vector<16x1xf32>
    %129 = vector.broadcast %128 : vector<16x1xf32> to vector<16x32xf32>
    %130 = arith.subf %124, %129 : vector<16x32xf32>
    %131 = arith.mulf %130, %130 : vector<16x32xf32>
    %cst_49 = arith.constant dense<0.000000e+00> : vector<16xf32>
    %132 = vector.multi_reduction <add>, %131, %cst_49 [1] : vector<16x32xf32> to vector<16xf32>
    %133 = vector.shape_cast %132 : vector<16xf32> to vector<16x1xf32>
    %cst_50 = arith.constant 3.200000e+01 : f32
    %134 = vector.broadcast %cst_50 : f32 to vector<16x1xf32>
    %135 = arith.divf %133, %134 : vector<16x1xf32>
    %cst_51 = arith.constant 9.99999974E-6 : f32
    %136 = vector.broadcast %cst_51 : f32 to vector<16x1xf32>
    %137 = arith.addf %135, %136 : vector<16x1xf32>
    %138 = math.rsqrt %137 : vector<16x1xf32>
    %139 = vector.broadcast %138 : vector<16x1xf32> to vector<16x32xf32>
    %140 = arith.mulf %130, %139 : vector<16x32xf32>
    %141 = vector.broadcast %15 : vector<1x32xf32> to vector<16x32xf32>
    %142 = arith.mulf %140, %141 : vector<16x32xf32>
    %143 = vector.broadcast %16 : vector<1x32xf32> to vector<16x32xf32>
    %144 = arith.addf %142, %143 : vector<16x32xf32>
    %145 = arith.truncf %144 : vector<16x32xf32> to vector<16x32xbf16>
    %cst_52 = arith.constant dense<0.000000e+00> : vector<16x96xf32>
    %146 = tpu.matmul %145, %4, %cst_52 {dimension_numbers = #tpu.dot_dimension_numbers<[1], [0], [0], [1], [0, 0, 1, 1], [], []>} : vector<16x32xbf16>, vector<32x96xbf16>, vector<16x96xf32> -> vector<16x96xf32>
    %147 = arith.truncf %146 : vector<16x96xf32> to vector<16x96xbf16>
    %148 = vector.extract_strided_slice %147 {offsets = [0, 0], sizes = [16, 8], strides = [1, 1]} : vector<16x96xbf16> to vector<16x8xbf16>
    %149 = vector.extract_strided_slice %147 {offsets = [0, 8], sizes = [16, 8], strides = [1, 1]} : vector<16x96xbf16> to vector<16x8xbf16>
    %150 = vector.extract_strided_slice %147 {offsets = [0, 16], sizes = [16, 8], strides = [1, 1]} : vector<16x96xbf16> to vector<16x8xbf16>
    %151 = vector.extract_strided_slice %147 {offsets = [0, 24], sizes = [16, 8], strides = [1, 1]} : vector<16x96xbf16> to vector<16x8xbf16>
    %152 = tpu.concatenate %148, %149, %150, %151 in 0 : vector<16x8xbf16>, vector<16x8xbf16>, vector<16x8xbf16>, vector<16x8xbf16> -> vector<64x8xbf16>
    %153 = vector.extract_strided_slice %147 {offsets = [0, 32], sizes = [16, 8], strides = [1, 1]} : vector<16x96xbf16> to vector<16x8xbf16>
    %154 = vector.extract_strided_slice %147 {offsets = [0, 40], sizes = [16, 8], strides = [1, 1]} : vector<16x96xbf16> to vector<16x8xbf16>
    %155 = vector.extract_strided_slice %147 {offsets = [0, 48], sizes = [16, 8], strides = [1, 1]} : vector<16x96xbf16> to vector<16x8xbf16>
    %156 = vector.extract_strided_slice %147 {offsets = [0, 56], sizes = [16, 8], strides = [1, 1]} : vector<16x96xbf16> to vector<16x8xbf16>
    %157 = tpu.concatenate %153, %154, %155, %156 in 0 : vector<16x8xbf16>, vector<16x8xbf16>, vector<16x8xbf16>, vector<16x8xbf16> -> vector<64x8xbf16>
    %158 = vector.extract_strided_slice %147 {offsets = [0, 64], sizes = [16, 8], strides = [1, 1]} : vector<16x96xbf16> to vector<16x8xbf16>
    %159 = vector.extract_strided_slice %147 {offsets = [0, 72], sizes = [16, 8], strides = [1, 1]} : vector<16x96xbf16> to vector<16x8xbf16>
    %160 = vector.extract_strided_slice %147 {offsets = [0, 80], sizes = [16, 8], strides = [1, 1]} : vector<16x96xbf16> to vector<16x8xbf16>
    %161 = vector.extract_strided_slice %147 {offsets = [0, 88], sizes = [16, 8], strides = [1, 1]} : vector<16x96xbf16> to vector<16x8xbf16>
    %162 = tpu.concatenate %158, %159, %160, %161 in 0 : vector<16x8xbf16>, vector<16x8xbf16>, vector<16x8xbf16>, vector<16x8xbf16> -> vector<64x8xbf16>
    %cst_53 = arith.constant dense<0.000000e+00> : vector<64x64xf32>
    %163 = tpu.matmul %152, %157, %cst_53 {dimension_numbers = #tpu.dot_dimension_numbers<[1], [1], [0], [0], [0, 0, 1, 0], [], []>} : vector<64x8xbf16>, vector<64x8xbf16>, vector<64x64xf32> -> vector<64x64xf32>
    %cst_54 = arith.constant 0.353553385 : f32
    %164 = vector.broadcast %cst_54 : f32 to vector<64x64xf32>
    %165 = arith.mulf %163, %164 : vector<64x64xf32>
    %cst_55 = arith.constant -1.000000e+30 : f32
    %166 = vector.broadcast %cst_55 : f32 to vector<64x64xf32>
    %167 = arith.select %27, %165, %166 : vector<64x64xi1>, vector<64x64xf32>
    %cst_56 = arith.constant dense<0xFF800000> : vector<64xf32>
    %168 = vector.multi_reduction <maximumf>, %167, %cst_56 [1] : vector<64x64xf32> to vector<64xf32>
    %169 = vector.shape_cast %168 : vector<64xf32> to vector<64x1xf32>
    %170 = vector.broadcast %169 : vector<64x1xf32> to vector<64x64xf32>
    %171 = arith.subf %167, %170 : vector<64x64xf32>
    %172 = math.exp %171 : vector<64x64xf32>
    %cst_57 = arith.constant dense<0.000000e+00> : vector<64xf32>
    %173 = vector.multi_reduction <add>, %172, %cst_57 [1] : vector<64x64xf32> to vector<64xf32>
    %174 = vector.shape_cast %173 : vector<64xf32> to vector<64x1xf32>
    %175 = vector.broadcast %174 : vector<64x1xf32> to vector<64x64xf32>
    %176 = arith.divf %172, %175 : vector<64x64xf32>
    %177 = arith.truncf %176 : vector<64x64xf32> to vector<64x64xbf16>
    %cst_58 = arith.constant dense<0.000000e+00> : vector<64x8xf32>
    %178 = tpu.matmul %177, %162, %cst_58 {dimension_numbers = #tpu.dot_dimension_numbers<[1], [0], [0], [1], [0, 0, 1, 1], [], []>} : vector<64x64xbf16>, vector<64x8xbf16>, vector<64x8xf32> -> vector<64x8xf32>
    %179 = vector.extract_strided_slice %178 {offsets = [0, 0], sizes = [16, 8], strides = [1, 1]} : vector<64x8xf32> to vector<16x8xf32>
    %180 = vector.extract_strided_slice %178 {offsets = [16, 0], sizes = [16, 8], strides = [1, 1]} : vector<64x8xf32> to vector<16x8xf32>
    %181 = vector.extract_strided_slice %178 {offsets = [32, 0], sizes = [16, 8], strides = [1, 1]} : vector<64x8xf32> to vector<16x8xf32>
    %182 = vector.extract_strided_slice %178 {offsets = [48, 0], sizes = [16, 8], strides = [1, 1]} : vector<64x8xf32> to vector<16x8xf32>
    %183 = tpu.concatenate %179, %180, %181, %182 in 1 : vector<16x8xf32>, vector<16x8xf32>, vector<16x8xf32>, vector<16x8xf32> -> vector<16x32xf32>
    %184 = arith.truncf %183 : vector<16x32xf32> to vector<16x32xbf16>
    %cst_59 = arith.constant dense<0.000000e+00> : vector<16x32xf32>
    %185 = tpu.matmul %184, %5, %cst_59 {dimension_numbers = #tpu.dot_dimension_numbers<[1], [0], [0], [1], [0, 0, 1, 1], [], []>} : vector<16x32xbf16>, vector<32x32xbf16>, vector<16x32xf32> -> vector<16x32xf32>
    %186 = vector.broadcast %17 : vector<1x32xf32> to vector<16x32xf32>
    %187 = arith.addf %185, %186 : vector<16x32xf32>
    %188 = arith.addf %124, %187 : vector<16x32xf32>
    %cst_60 = arith.constant dense<0.000000e+00> : vector<16xf32>
    %189 = vector.multi_reduction <add>, %188, %cst_60 [1] : vector<16x32xf32> to vector<16xf32>
    %190 = vector.shape_cast %189 : vector<16xf32> to vector<16x1xf32>
    %cst_61 = arith.constant 3.200000e+01 : f32
    %191 = vector.broadcast %cst_61 : f32 to vector<16x1xf32>
    %192 = arith.divf %190, %191 : vector<16x1xf32>
    %193 = vector.broadcast %192 : vector<16x1xf32> to vector<16x32xf32>
    %194 = arith.subf %188, %193 : vector<16x32xf32>
    %195 = arith.mulf %194, %194 : vector<16x32xf32>
    %cst_62 = arith.constant dense<0.000000e+00> : vector<16xf32>
    %196 = vector.multi_reduction <add>, %195, %cst_62 [1] : vector<16x32xf32> to vector<16xf32>
    %197 = vector.shape_cast %196 : vector<16xf32> to vector<16x1xf32>
    %cst_63 = arith.constant 3.200000e+01 : f32
    %198 = vector.broadcast %cst_63 : f32 to vector<16x1xf32>
    %199 = arith.divf %197, %198 : vector<16x1xf32>
    %cst_64 = arith.constant 9.99999974E-6 : f32
    %200 = vector.broadcast %cst_64 : f32 to vector<16x1xf32>
    %201 = arith.addf %199, %200 : vector<16x1xf32>
    %202 = math.rsqrt %201 : vector<16x1xf32>
    %203 = vector.broadcast %202 : vector<16x1xf32> to vector<16x32xf32>
    %204 = arith.mulf %194, %203 : vector<16x32xf32>
    %205 = vector.broadcast %18 : vector<1x32xf32> to vector<16x32xf32>
    %206 = arith.mulf %204, %205 : vector<16x32xf32>
    %207 = vector.broadcast %19 : vector<1x32xf32> to vector<16x32xf32>
    %208 = arith.addf %206, %207 : vector<16x32xf32>
    %209 = arith.truncf %208 : vector<16x32xf32> to vector<16x32xbf16>
    %cst_65 = arith.constant dense<0.000000e+00> : vector<16x256xf32>
    %210 = tpu.matmul %209, %6, %cst_65 {dimension_numbers = #tpu.dot_dimension_numbers<[1], [0], [0], [1], [0, 0, 1, 1], [], []>} : vector<16x32xbf16>, vector<32x256xbf16>, vector<16x256xf32> -> vector<16x256xf32>
    %211 = vector.broadcast %20 : vector<1x256xf32> to vector<16x256xf32>
    %212 = arith.addf %210, %211 : vector<16x256xf32>
    %213 = vector.extract_strided_slice %212 {offsets = [0, 0], sizes = [16, 128], strides = [1, 1]} : vector<16x256xf32> to vector<16x128xf32>
    %214 = vector.extract_strided_slice %212 {offsets = [0, 128], sizes = [16, 128], strides = [1, 1]} : vector<16x256xf32> to vector<16x128xf32>
    %cst_66 = arith.constant 5.000000e-01 : f32
    %215 = vector.broadcast %cst_66 : f32 to vector<16x128xf32>
    %216 = arith.mulf %215, %214 : vector<16x128xf32>
    %cst_67 = arith.constant 0.707106769 : f32
    %217 = vector.broadcast %cst_67 : f32 to vector<16x128xf32>
    %218 = arith.mulf %214, %217 : vector<16x128xf32>
    %219 = math.absf %218 : vector<16x128xf32>
    %cst_68 = arith.constant 0.327591091 : f32
    %220 = vector.broadcast %cst_68 : f32 to vector<16x128xf32>
    %221 = arith.mulf %220, %219 : vector<16x128xf32>
    %cst_69 = arith.constant 1.000000e+00 : f32
    %222 = vector.broadcast %cst_69 : f32 to vector<16x128xf32>
    %223 = arith.addf %222, %221 : vector<16x128xf32>
    %cst_70 = arith.constant 1.000000e+00 : f32
    %224 = vector.broadcast %cst_70 : f32 to vector<16x128xf32>
    %225 = arith.divf %224, %223 : vector<16x128xf32>
    %cst_71 = arith.constant 1.06140542 : f32
    %226 = vector.broadcast %cst_71 : f32 to vector<16x128xf32>
    %227 = arith.mulf %226, %225 : vector<16x128xf32>
    %cst_72 = arith.constant 1.45315206 : f32
    %228 = vector.broadcast %cst_72 : f32 to vector<16x128xf32>
    %229 = arith.subf %227, %228 : vector<16x128xf32>
    %230 = arith.mulf %229, %225 : vector<16x128xf32>
    %cst_73 = arith.constant 1.42141378 : f32
    %231 = vector.broadcast %cst_73 : f32 to vector<16x128xf32>
    %232 = arith.addf %230, %231 : vector<16x128xf32>
    %233 = arith.mulf %232, %225 : vector<16x128xf32>
    %cst_74 = arith.constant 0.284496725 : f32
    %234 = vector.broadcast %cst_74 : f32 to vector<16x128xf32>
    %235 = arith.subf %233, %234 : vector<16x128xf32>
    %236 = arith.mulf %235, %225 : vector<16x128xf32>
    %cst_75 = arith.constant 0.254829586 : f32
    %237 = vector.broadcast %cst_75 : f32 to vector<16x128xf32>
    %238 = arith.addf %236, %237 : vector<16x128xf32>
    %239 = arith.mulf %238, %225 : vector<16x128xf32>
    %cst_76 = arith.constant 0.000000e+00 : f32
    %240 = vector.broadcast %cst_76 : f32 to vector<16x128xf32>
    %241 = arith.subf %240, %219 : vector<16x128xf32>
    %242 = arith.mulf %241, %219 : vector<16x128xf32>
    %243 = math.exp %242 : vector<16x128xf32>
    %244 = arith.mulf %239, %243 : vector<16x128xf32>
    %cst_77 = arith.constant 1.000000e+00 : f32
    %245 = vector.broadcast %cst_77 : f32 to vector<16x128xf32>
    %246 = arith.subf %245, %244 : vector<16x128xf32>
    %cst_78 = arith.constant 0.000000e+00 : f32
    %247 = vector.broadcast %cst_78 : f32 to vector<16x128xf32>
    %248 = arith.cmpf oge, %218, %247 : vector<16x128xf32>
    %cst_79 = arith.constant 0.000000e+00 : f32
    %249 = vector.broadcast %cst_79 : f32 to vector<16x128xf32>
    %250 = arith.subf %249, %246 : vector<16x128xf32>
    %251 = arith.select %248, %246, %250 : vector<16x128xi1>, vector<16x128xf32>
    %cst_80 = arith.constant 1.000000e+00 : f32
    %252 = vector.broadcast %cst_80 : f32 to vector<16x128xf32>
    %253 = arith.addf %252, %251 : vector<16x128xf32>
    %254 = arith.mulf %216, %253 : vector<16x128xf32>
    %255 = arith.mulf %213, %254 : vector<16x128xf32>
    %256 = arith.truncf %255 : vector<16x128xf32> to vector<16x128xbf16>
    %cst_81 = arith.constant dense<0.000000e+00> : vector<16x32xf32>
    %257 = tpu.matmul %256, %7, %cst_81 {dimension_numbers = #tpu.dot_dimension_numbers<[1], [0], [0], [1], [0, 0, 1, 1], [], []>} : vector<16x128xbf16>, vector<128x32xbf16>, vector<16x32xf32> -> vector<16x32xf32>
    %258 = vector.broadcast %21 : vector<1x32xf32> to vector<16x32xf32>
    %259 = arith.addf %257, %258 : vector<16x32xf32>
    %260 = arith.addf %188, %259 : vector<16x32xf32>
    %261 = arith.truncf %260 : vector<16x32xf32> to vector<16x32xbf16>
    %cst_82 = arith.constant dense<0.000000e+00> : vector<16x32xf32>
    %262 = tpu.matmul %261, %8, %cst_82 {dimension_numbers = #tpu.dot_dimension_numbers<[1], [0], [0], [1], [0, 0, 1, 1], [], []>} : vector<16x32xbf16>, vector<32x32xbf16>, vector<16x32xf32> -> vector<16x32xf32>
    %263 = vector.broadcast %22 : vector<1x32xf32> to vector<16x32xf32>
    %264 = arith.addf %262, %263 : vector<16x32xf32>
    %c0_83 = arith.constant 0 : index
    %c0_84 = arith.constant 0 : index
    %265 = vector.load %arg3[%c0_83, %c0_84] : memref<16x32xf32, #tpu.memory_space<vmem>>, vector<16x32xf32>
    tpu.vector_store %arg3[%c0_83, %c0_84], %264 {strides = array<i32>} : memref<16x32xf32, #tpu.memory_space<vmem>>, vector<16x32xf32>,
    return
  }
}

</mosaic_0001>

<llo_original>
// kernel: retrieval_token_transformer.1
$region0: #{retrieval_token_transformer.1}
  #allocation0 [shape = 'u32[]', space=smem, size = 0x4, offset = 0x4, fixed_abs, tag = 'smem constant byte address 0x4 - core index']
  #allocation1 [shape = 'u32[144,128]{1,0:T(1,128)}', space=vmem, size = 0x12000, scoped, tag = 'internal scratch']
  %s0 = inlined_call_operand.vmem [shape: s32[16,1], index: 0, kind: input, shape index: {}]
  %s1 = inlined_call_operand.hbm [shape: bf16[416,256], index: 1, kind: input, shape index: {}]
  %s2 = inlined_call_operand.hbm [shape: f32[16,256], index: 2, kind: input, shape index: {}]
  %s3 = inlined_call_operand.hbm [shape: f32[16,32], index: 3, kind: output, shape index: {}]
  %s4 = sld [smem:[#allocation0]]
  $region30: #{retrieval_token_transformer.1} parent=0
    _
  %s6 = ssub.s32 1, %s4
  %s7 = scalar_select 0, %s6, %s4
  $region1: #{retrieval_token_transformer.1} parent=0
    #allocation2 [shape = 'u8[212992]{0}', space=vmem, size = 0x34000, scoped, tag = 'input window, operand 1, single buffered']
    #allocation3 [shape = 's32[1]{0}', space=sflag, size = 0x4, scoped, tag = 'scoped memory for retrieval_token_transformer.1']
    #allocation4 [shape = 's32[1]{0}', space=sflag, size = 0x4, scoped, tag = 'scoped memory for retrieval_token_transformer.1']
    #allocation5 [shape = 'u8[16384]{0}', space=vmem, size = 0x4000, scoped, tag = 'input window, operand 2, single buffered']
    #allocation6 [shape = 's32[1]{0}', space=sflag, size = 0x4, scoped, tag = 'scoped memory for retrieval_token_transformer.1']
    #allocation7 [shape = 'u8[8192]{0}', space=vmem, size = 0x2000, scoped, tag = 'output window, operand 0, single buffered']
    %8 = vsyncpa [#allocation3], 0
    %9 = vsyncpa [#allocation6], 0
    %10 = vsyncpa [#allocation4], 0
    // Predicated region
    $region2: #{retrieval_token_transformer.1} parent=1 // pred_check
      _
    $region3: #{retrieval_token_transformer.1} parent=1 // pred_check_branch
      %12 = sbr.rel (0) target = $region5
    $region4: #{retrieval_token_transformer.1} parent=1 // pred_region
      _
    $region5: #{retrieval_token_transformer.1} parent=1 // pred_fallthru
      _
    // Predicated region
    $region6: #{retrieval_token_transformer.1} parent=1 // pred_check
      _
    $region7: #{retrieval_token_transformer.1} parent=1 // pred_check_branch
      %14 = sbr.rel (0) target = $region9
    $region8: #{retrieval_token_transformer.1} parent=1 // pred_region
      %s16 = ssub.s32 6656, 6656
      %17 = vsyncadd [#allocation3], %s16
      %s18 = sshll.u32 [#allocation2], 4
      %s19 = int_to_ptr.vmem [resolvable:$true] %s18
      %24 = dma.hbm_to_vmem [thread:$0]  %s1, 6656, %s19, [#allocation3], 128, 128, 8
    $region9: #{retrieval_token_transformer.1} parent=1 // pred_fallthru
      _
    // Predicated region
    $region10: #{retrieval_token_transformer.1} parent=1 // pred_check
      _
    $region11: #{retrieval_token_transformer.1} parent=1 // pred_check_branch
      %26 = sbr.rel (0) target = $region13
    $region12: #{retrieval_token_transformer.1} parent=1 // pred_region
      %s28 = ssub.s32 512, 512
      %29 = vsyncadd [#allocation6], %s28
      %s30 = sshll.u32 [#allocation5], 4
      %s31 = int_to_ptr.vmem [resolvable:$true] %s30
      %36 = dma.hbm_to_vmem [thread:$0]  %s2, 512, %s31, [#allocation6], 256, 256, 16
    $region13: #{retrieval_token_transformer.1} parent=1 // pred_fallthru
      _
    // Predicated region
    $region14: #{retrieval_token_transformer.1} parent=1 // pred_check
      _
    $region15: #{retrieval_token_transformer.1} parent=1 // pred_check_branch
      %38 = sbr.rel (0) target = $region17
    $region16: #{retrieval_token_transformer.1} parent=1 // pred_region
      %39 = dma.done [#allocation3], 6656
    $region17: #{retrieval_token_transformer.1} parent=1 // pred_fallthru
      _
    // Predicated region
    $region18: #{retrieval_token_transformer.1} parent=1 // pred_check
      _
    $region19: #{retrieval_token_transformer.1} parent=1 // pred_check_branch
      %41 = sbr.rel (0) target = $region21
    $region20: #{retrieval_token_transformer.1} parent=1 // pred_region
      %42 = dma.done [#allocation6], 512
    $region21: #{retrieval_token_transformer.1} parent=1 // pred_fallthru
      _
    %v44 = vld [vmem:[#allocation2] sm:$0xf]
    %v45 = vld [vmem:[#allocation2 + $0x8] sm:$0xf]
    %v46 = vld [vmem:[#allocation2 + $0x10] sm:$0xf]
    %v47 = vld [vmem:[#allocation2 + $0x18] sm:$0xf]
    %v48 = vld [vmem:[#allocation2 + $0x20] sm:$0xf]
    %v49 = vld [vmem:[#allocation2 + $0x28] sm:$0xf]
    %v50 = vld [vmem:[#allocation2 + $0x30] sm:$0xf]
    %v51 = vld [vmem:[#allocation2 + $0x38] sm:$0xf]
    %v52 = vld [vmem:[#allocation2 + $0x40] sm:$0xf]
    %v53 = vld [vmem:[#allocation2 + $0x48] sm:$0xf]
    %v54 = vld [vmem:[#allocation2 + $0x50] sm:$0xf]
    %v55 = vld [vmem:[#allocation2 + $0x58] sm:$0xf]
    %v56 = vld [vmem:[#allocation2 + $0x60] sm:$0xf]
    %v57 = vld [vmem:[#allocation2 + $0x68] sm:$0xf]
    %v58 = vld [vmem:[#allocation2 + $0x70] sm:$0xf]
    %v59 = vld [vmem:[#allocation2 + $0x78] sm:$0xf]
    %v60 = vld [vmem:[#allocation2 + $0x80] sm:$0xf]
    %v61 = vld [vmem:[#allocation2 + $0x88] sm:$0xf]
    %v62 = vld [vmem:[#allocation2 + $0x90] sm:$0xf]
    %v63 = vld [vmem:[#allocation2 + $0x98] sm:$0xf]
    %v64 = vld [vmem:[#allocation2 + $0xa0] sm:$0xf]
    %v65 = vld [vmem:[#allocation2 + $0xa8] sm:$0xf]
    %v66 = vld [vmem:[#allocation2 + $0xb0] sm:$0xf]
    %v67 = vld [vmem:[#allocation2 + $0xb8] sm:$0xf]
    %v68 = vld [vmem:[#allocation2 + $0xc0] sm:$0xf]
    %v69 = vld [vmem:[#allocation2 + $0xc8] sm:$0xf]
    %v70 = vld [vmem:[#allocation2 + $0xd0] sm:$0xf]
    %v71 = vld [vmem:[#allocation2 + $0xd8] sm:$0xf]
    %v72 = vld [vmem:[#allocation2 + $0xe0] sm:$0xff]
    %v73 = vld [vmem:[#allocation2 + $0xe8] sm:$0xff]
    %v74 = vld [vmem:[#allocation2 + $0xf0] sm:$0xff]
    %v75 = vld [vmem:[#allocation2 + $0xf8] sm:$0xff]
    %v76 = vld [vmem:[#allocation2 + $0x100] sm:$0xf]
    %v77 = vld [vmem:[#allocation2 + $0x108] sm:$0xf]
    %v78 = vld [vmem:[#allocation2 + $0x110] sm:$0xf]
    %v79 = vld [vmem:[#allocation2 + $0x118] sm:$0xf]
    %v80 = vld [vmem:[#allocation2 + $0x120] sm:$0xf]
    %v81 = vld [vmem:[#allocation2 + $0x128] sm:$0xf]
    %v82 = vld [vmem:[#allocation2 + $0x130] sm:$0xf]
    %v83 = vld [vmem:[#allocation2 + $0x138] sm:$0xf]
    %v84 = vld [vmem:[#allocation2 + $0x140] sm:$0xf]
    %v85 = vld [vmem:[#allocation2 + $0x148] sm:$0xf]
    %v86 = vld [vmem:[#allocation2 + $0x150] sm:$0xf]
    %v87 = vld [vmem:[#allocation2 + $0x158] sm:$0xf]
    %v88 = vld [vmem:[#allocation2 + $0x160] sm:$0xf]
    %v89 = vld [vmem:[#allocation2 + $0x168] sm:$0xf]
    %v90 = vld [vmem:[#allocation2 + $0x170] sm:$0xf]
    %v91 = vld [vmem:[#allocation2 + $0x178] sm:$0xf]
    %v92 = vld [vmem:[#allocation2 + $0x180] sm:$0xf]
    %v93 = vld [vmem:[#allocation2 + $0x188] sm:$0xf]
    %v94 = vld [vmem:[#allocation2 + $0x190] sm:$0xf]
    %v95 = vld [vmem:[#allocation2 + $0x198] sm:$0xf]
    %v96 = vld [vmem:[#allocation5] ss:$0 sm:$0xff]
    %v97 = vld [vmem:[#allocation5 + $0x1] ss:$0 sm:$0xff]
    %v98 = vld [vmem:[#allocation5 + $0x2] ss:$0 sm:$0xff]
    %v99 = vld [vmem:[#allocation5 + $0x3] ss:$0 sm:$0xff]
    %v100 = vld [vmem:[#allocation5 + $0x4] ss:$0 sm:$0xff]
    %v101 = vld [vmem:[#allocation5 + $0x5] ss:$0 sm:$0xff]
    %v102 = vld [vmem:[#allocation5 + $0x6] ss:$0 sm:$0xff]
    %v103 = vld [vmem:[#allocation5 + $0x7] ss:$0 sm:$0xff]
    %v104 = vld [vmem:[#allocation5 + $0x10] ss:$0 sm:$0xff]
    %v105 = vld [vmem:[#allocation5 + $0x11] ss:$0 sm:$0xff]
    %v106 = vld [vmem:[#allocation5 + $0x12] ss:$0 sm:$0xff]
    %s107 = scalar_lea.vmem [#allocation5], 19
    %v108 = vld [vmem:[%s107] ss:$8 sm:$0x3]
    %v109 = vld [vmem:[#allocation5 + $0x14] ss:$0 sm:$0xff]
    %v110 = vld [vmem:[#allocation5 + $0x15] ss:$0 sm:$0xff]
    %v111 = vlaneseq
    %v112 = vshrl.u32 %v111, 7
    %v113 = vadd.s32 %v112, 8
    %v114 = vadd.s32 %v112, 16
    %v115 = vadd.s32 %v112, 24
    %v116 = vadd.s32 %v112, 32
    %v117 = vadd.s32 %v112, 40
    %v118 = vadd.s32 %v112, 48
    %v119 = vadd.s32 %v112, 56
    %v120 = vlaneseq
    %v121 = vand.u32 %v120, 127
    %v122 = vxor.u32 %v112, %v121
    %v123 = vxor.u32 %v113, %v121
    %v124 = vxor.u32 %v114, %v121
    %v125 = vxor.u32 %v115, %v121
    %v126 = vxor.u32 %v116, %v121
    %v127 = vxor.u32 %v117, %v121
    %v128 = vxor.u32 %v118, %v121
    %v129 = vxor.u32 %v119, %v121
    %vm130 = vcmp.lt.s32.totalorder %v122, 8
    %vm131 = vcmp.lt.s32.totalorder %v123, 8
    %vm132 = vcmp.lt.s32.totalorder %v124, 8
    %vm133 = vcmp.lt.s32.totalorder %v125, 8
    %vm134 = vcmp.lt.s32.totalorder %v126, 8
    %vm135 = vcmp.lt.s32.totalorder %v127, 8
    %vm136 = vcmp.lt.s32.totalorder %v128, 8
    %vm137 = vcmp.lt.s32.totalorder %v129, 8
    %v138 = vld [vmem:[%s0] sm:$0xff]
    %v139 = vld [vmem:[%s0 + $0x8] sm:$0xff]
    %140 = vset.pattern.permute.xlu0 0
    %141 = vperm.xlu0 %140, %v138
    %v142 = vpop.permute.xlu0 %141
    %143 = vset.pattern.permute.xlu0 0
    %144 = vperm.xlu0 %143, %v139
    %v145 = vpop.permute.xlu0 %144
    %vm146 = vcmp.eq.s32.totalorder %v142, %v121
    %vm147 = vcmp.eq.s32.totalorder %v145, %v121
    %v148 = vsel %vm146, 1.0, 0.0
    %v149 = vsel %vm147, 1.0, 0.0
    %v150 = vpack.c.bf16 %v149, %v148
    %v159 = vunpack.c.l.b16 %v44
    %v160 = vunpack.c.l.b16 %v45
    %v161 = vunpack.c.l.b16 %v46
    %v162 = vunpack.c.l.b16 %v47
    %v163 = vunpack.c.l.b16 %v48
    %v164 = vunpack.c.l.b16 %v49
    %v165 = vunpack.c.l.b16 %v50
    %v166 = vunpack.c.l.b16 %v51
    %v167 = vpack.c.b16 %v160, %v159
    %v168 = vpack.c.b16 %v162, %v161
    %v169 = vpack.c.b16 %v164, %v163
    %v170 = vpack.c.b16 %v166, %v165
    %vm175 = vcmask 523264
    %v177 = vsel %vm175, %v150, 0
    %179 = vmatprep.subr.bf16.mxu0 0
    %180 = vmatpush1.bf16.msra.mxu0 0
    %181 = vmatprep.subr.bf16.mxu0 0
    %182 = vmatpush1.bf16.msra.mxu0 0
    %183 = vmatprep.subr.bf16.mxu0 0
    %184 = vmatpush1.bf16.msra.mxu0 0
    %185 = vmatprep.subr.bf16.mxu0 0
    %186 = vmatpush1.bf16.msra.mxu0 0
    %187 = vmatprep.subr.bf16.mxu0 0
    %188 = vmatpush1.bf16.msra.mxu0 %v170
    %189 = vmatprep.subr.bf16.mxu0 0
    %190 = vmatpush1.bf16.msra.mxu0 %v169
    %191 = vmatprep.subr.bf16.mxu0 0
    %192 = vmatpush1.bf16.msra.mxu0 %v168
    %193 = vmatprep.subr.bf16.mxu0 0
    %194 = vmatpush1.bf16.msra.mxu0 %v167
    %195 = vmatprep.subr.bf16.mxu0 0
    %196 = vmatpush2.bf16.msra.mxu0 0
    %197 = vmatprep.subr.bf16.mxu0 0
    %198 = vmatpush2.bf16.msra.mxu0 0
    %199 = vmatprep.subr.bf16.mxu0 0
    %200 = vmatpush2.bf16.msra.mxu0 0
    %201 = vmatprep.subr.bf16.mxu0 0
    %202 = vmatpush2.bf16.msra.mxu0 0
    %203 = vmatprep.subr.bf16.mxu0 0
    %204 = vmatpush2.bf16.msra.mxu0 0
    %205 = vmatprep.subr.bf16.mxu0 0
    %206 = vmatpush2.bf16.msra.mxu0 0
    %207 = vmatprep.subr.bf16.mxu0 0
    %208 = vmatpush2.bf16.msra.mxu0 0
    %209 = vmatprep.subr.bf16.mxu0 0
    %210 = vmatpush2.bf16.msra.mxu0 0
    %211 = vmatprep.mubr.bf16.mxu0 0
    %212 = vmatmul.mubr.bf16.gmra.mxu0 %v177
    %v213 = vpop.f32.mrf.mxu0
    %v214 = vadd.f32 0.0, %v213
    %v215 = vpop.f32.mrf.mxu0
    %v216 = vpop.f32.mrf.mxu0
    %v217 = vadd.f32 0.0, %v216
    %v218 = vpop.f32.mrf.mxu0
    %219 = vdwg.mxu0
    %vm220 = vcmask 261120
    %v221 = vsel %vm220, %v214, 0.0
    %222 = vadd.xlane.f32.xlu0 %v221
    %v223 = vpop.xlane.xlu0 %222
    %v224 = vsel %vm220, %v217, 0.0
    %225 = vadd.xlane.f32.xlu0 %v224
    %v226 = vpop.xlane.xlu0 %225
    %v227 = vrcp.pop 32.0
    %v228 = vmul.f32 %v223, %v227
    %v229 = vmul.f32 %v226, %v227
    %v230 = vsub.f32 %v214, %v228
    %v231 = vsub.f32 %v217, %v229
    %v232 = vmul.f32 %v230, %v230
    %v233 = vmul.f32 %v231, %v231
    %v234 = vsel %vm220, %v232, 0.0
    %235 = vadd.xlane.f32.xlu0 %v234
    %v236 = vpop.xlane.xlu0 %235
    %v237 = vsel %vm220, %v233, 0.0
    %238 = vadd.xlane.f32.xlu0 %v237
    %v239 = vpop.xlane.xlu0 %238
    %v240 = vmul.f32 %v236, %v227
    %v241 = vmul.f32 %v239, %v227
    %v242 = vadd.f32 %v240, 1e-05
    %v243 = vadd.f32 %v241, 1e-05
    %v244 = vrsqrt.pop %v242
    %v245 = vrsqrt.pop %v243
    %v246 = vmul.f32 %v230, %v244
    %v247 = vmul.f32 %v231, %v245
    %v248 = vmul.f32 %v246, %v96
    %v249 = vmul.f32 %v247, %v96
    %v250 = vadd.f32 %v248, %v97
    %v251 = vadd.f32 %v249, %v97
    %v252 = vpack.c.bf16 %v251, %v250
    %v257 = vunpack.c.l.b16 %v52
    %v258 = vunpack.c.l.b16 %v53
    %v259 = vunpack.c.l.b16 %v54
    %v260 = vunpack.c.l.b16 %v55
    %v261 = vpack.c.b16 %v258, %v257
    %v262 = vpack.c.b16 %v260, %v259
    %v266 = vsel %vm220, %v252, 0
    %268 = vmatprep.subr.bf16.mxu0 0
    %269 = vmatpush1.bf16.msra.mxu0 0
    %270 = vmatprep.subr.bf16.mxu0 0
    %271 = vmatpush1.bf16.msra.mxu0 0
    %272 = vmatprep.subr.bf16.mxu0 0
    %273 = vmatpush1.bf16.msra.mxu0 0
    %274 = vmatprep.subr.bf16.mxu0 0
    %275 = vmatpush1.bf16.msra.mxu0 0
    %276 = vmatprep.subr.bf16.mxu0 0
    %277 = vmatpush1.bf16.msra.mxu0 0
    %278 = vmatprep.subr.bf16.mxu0 0
    %279 = vmatpush1.bf16.msra.mxu0 0
    %280 = vmatprep.subr.bf16.mxu0 0
    %281 = vmatpush1.bf16.msra.mxu0 %v262
    %282 = vmatprep.subr.bf16.mxu0 0
    %283 = vmatpush1.bf16.msra.mxu0 %v261
    %284 = vmatprep.subr.bf16.mxu0 0
    %285 = vmatpush2.bf16.msra.mxu0 0
    %286 = vmatprep.subr.bf16.mxu0 0
    %287 = vmatpush2.bf16.msra.mxu0 0
    %288 = vmatprep.subr.bf16.mxu0 0
    %289 = vmatpush2.bf16.msra.mxu0 0
    %290 = vmatprep.subr.bf16.mxu0 0
    %291 = vmatpush2.bf16.msra.mxu0 0
    %292 = vmatprep.subr.bf16.mxu0 0
    %293 = vmatpush2.bf16.msra.mxu0 0
    %294 = vmatprep.subr.bf16.mxu0 0
    %295 = vmatpush2.bf16.msra.mxu0 0
    %296 = vmatprep.subr.bf16.mxu0 0
    %297 = vmatpush2.bf16.msra.mxu0 0
    %298 = vmatprep.subr.bf16.mxu0 0
    %299 = vmatpush2.bf16.msra.mxu0 0
    %300 = vmatprep.mubr.bf16.mxu0 0
    %301 = vmatmul.mubr.bf16.gmra.mxu0 %v266
    %v302 = vpop.f32.mrf.mxu0
    %v303 = vadd.f32 %v98, %v302
    %v304 = vpop.f32.mrf.mxu0
    %v305 = vpop.f32.mrf.mxu0
    %v306 = vadd.f32 %v98, %v305
    %v307 = vpop.f32.mrf.mxu0
    %308 = vdwg.mxu0
    %v309 = vsel %vm220, %v303, 0.0
    %310 = vadd.xlane.f32.xlu0 %v309
    %v311 = vpop.xlane.xlu0 %310
    %v312 = vsel %vm220, %v306, 0.0
    %313 = vadd.xlane.f32.xlu0 %v312
    %v314 = vpop.xlane.xlu0 %313
    %v315 = vmul.f32 %v311, %v227
    %v316 = vmul.f32 %v314, %v227
    %v317 = vsub.f32 %v303, %v315
    %v318 = vsub.f32 %v306, %v316
    %v319 = vmul.f32 %v317, %v317
    %v320 = vmul.f32 %v318, %v318
    %v321 = vsel %vm220, %v319, 0.0
    %322 = vadd.xlane.f32.xlu0 %v321
    %v323 = vpop.xlane.xlu0 %322
    %v324 = vsel %vm220, %v320, 0.0
    %325 = vadd.xlane.f32.xlu0 %v324
    %v326 = vpop.xlane.xlu0 %325
    %v327 = vmul.f32 %v323, %v227
    %v328 = vmul.f32 %v326, %v227
    %v329 = vadd.f32 %v327, 1e-05
    %v330 = vadd.f32 %v328, 1e-05
    %v331 = vrsqrt.pop %v329
    %v332 = vrsqrt.pop %v330
    %v333 = vmul.f32 %v317, %v331
    %v334 = vmul.f32 %v318, %v332
    %v335 = vmul.f32 %v333, %v99
    %v336 = vmul.f32 %v334, %v99
    %v337 = vadd.f32 %v335, %v100
    %v338 = vadd.f32 %v336, %v100
    %v339 = vpack.c.bf16 %v338, %v337
    %v344 = vunpack.c.l.b16 %v56
    %v345 = vunpack.c.l.b16 %v57
    %v346 = vunpack.c.l.b16 %v58
    %v347 = vunpack.c.l.b16 %v59
    %v348 = vpack.c.b16 %v345, %v344
    %v349 = vpack.c.b16 %v347, %v346
    %v353 = vsel %vm220, %v339, 0
    %355 = vmatprep.subr.bf16.mxu0 0
    %356 = vmatpush1.bf16.msra.mxu0 0
    %357 = vmatprep.subr.bf16.mxu0 0
    %358 = vmatpush1.bf16.msra.mxu0 0
    %359 = vmatprep.subr.bf16.mxu0 0
    %360 = vmatpush1.bf16.msra.mxu0 0
    %361 = vmatprep.subr.bf16.mxu0 0
    %362 = vmatpush1.bf16.msra.mxu0 0
    %363 = vmatprep.subr.bf16.mxu0 0
    %364 = vmatpush1.bf16.msra.mxu0 0
    %365 = vmatprep.subr.bf16.mxu0 0
    %366 = vmatpush1.bf16.msra.mxu0 0
    %367 = vmatprep.subr.bf16.mxu0 0
    %368 = vmatpush1.bf16.msra.mxu0 %v349
    %369 = vmatprep.subr.bf16.mxu0 0
    %370 = vmatpush1.bf16.msra.mxu0 %v348
    %371 = vmatprep.subr.bf16.mxu0 0
    %372 = vmatpush2.bf16.msra.mxu0 0
    %373 = vmatprep.subr.bf16.mxu0 0
    %374 = vmatpush2.bf16.msra.mxu0 0
    %375 = vmatprep.subr.bf16.mxu0 0
    %376 = vmatpush2.bf16.msra.mxu0 0
    %377 = vmatprep.subr.bf16.mxu0 0
    %378 = vmatpush2.bf16.msra.mxu0 0
    %379 = vmatprep.subr.bf16.mxu0 0
    %380 = vmatpush2.bf16.msra.mxu0 0
    %381 = vmatprep.subr.bf16.mxu0 0
    %382 = vmatpush2.bf16.msra.mxu0 0
    %383 = vmatprep.subr.bf16.mxu0 0
    %384 = vmatpush2.bf16.msra.mxu0 0
    %385 = vmatprep.subr.bf16.mxu0 0
    %386 = vmatpush2.bf16.msra.mxu0 0
    %387 = vmatprep.mubr.bf16.mxu0 0
    %388 = vmatmul.mubr.bf16.gmra.mxu0 %v353
    %v389 = vpop.f32.mrf.mxu0
    %v390 = vadd.f32 0.0, %v389
    %v391 = vpop.f32.mrf.mxu0
    %v392 = vpop.f32.mrf.mxu0
    %v393 = vadd.f32 0.0, %v392
    %v394 = vpop.f32.mrf.mxu0
    %395 = vdwg.mxu0
    %v396 = vpack.c.bf16 %v393, %v390
    %398 = vrot.lane.b32.xlu0 %v396, 120
    %v399 = vpop.permute.xlu0 %398
    %400 = vrot.lane.b32.xlu0 %v396, 112
    %v401 = vpop.permute.xlu0 %400
    %402 = vrot.lane.b32.xlu0 %v396, 104
    %v403 = vpop.permute.xlu0 %402
    %404 = vrot.lane.b32.xlu0 %v396, 96
    %v405 = vpop.permute.xlu0 %404
    %406 = vrot.lane.b32.xlu0 %v399, 96
    %v407 = vpop.permute.xlu0 %406
    %408 = vrot.lane.b32.xlu0 %v401, 96
    %v409 = vpop.permute.xlu0 %408
    %410 = vrot.lane.b32.xlu0 %v403, 96
    %v411 = vpop.permute.xlu0 %410
    %vm412 = vcmask 64512
    %v414 = vsel %vm412, %v396, 0
    %v417 = vsel %vm412, %v399, 0
    %v420 = vsel %vm412, %v401, 0
    %v423 = vsel %vm412, %v403, 0
    %v426 = vsel %vm412, %v405, 0
    %v429 = vsel %vm412, %v407, 0
    %v432 = vsel %vm412, %v409, 0
    %v435 = vsel %vm412, %v411, 0
    %437 = vmatprep.subr.bf16.mxu0 0
    %438 = vmatpush1.bf16.xpose.msra.mxu0 0
    %439 = vmatprep.subr.bf16.mxu0 0
    %440 = vmatpush1.bf16.xpose.msra.mxu0 0
    %441 = vmatprep.subr.bf16.mxu0 0
    %442 = vmatpush1.bf16.xpose.msra.mxu0 0
    %443 = vmatprep.subr.bf16.mxu0 0
    %444 = vmatpush1.bf16.xpose.msra.mxu0 0
    %445 = vmatprep.subr.bf16.mxu0 0
    %446 = vmatpush1.bf16.xpose.msra.mxu0 %v435
    %447 = vmatprep.subr.bf16.mxu0 0
    %448 = vmatpush1.bf16.xpose.msra.mxu0 %v432
    %449 = vmatprep.subr.bf16.mxu0 0
    %450 = vmatpush1.bf16.xpose.msra.mxu0 %v429
    %451 = vmatprep.subr.bf16.mxu0 0
    %452 = vmatpush1.bf16.xpose.msra.mxu0 %v426
    %453 = vmatprep.subr.bf16.mxu0 0
    %454 = vmatpush2.bf16.xpose.msra.mxu0 0
    %455 = vmatprep.subr.bf16.mxu0 0
    %456 = vmatpush2.bf16.xpose.msra.mxu0 0
    %457 = vmatprep.subr.bf16.mxu0 0
    %458 = vmatpush2.bf16.xpose.msra.mxu0 0
    %459 = vmatprep.subr.bf16.mxu0 0
    %460 = vmatpush2.bf16.xpose.msra.mxu0 0
    %461 = vmatprep.subr.bf16.mxu0 0
    %462 = vmatpush2.bf16.xpose.msra.mxu0 0
    %463 = vmatprep.subr.bf16.mxu0 0
    %464 = vmatpush2.bf16.xpose.msra.mxu0 0
    %465 = vmatprep.subr.bf16.mxu0 0
    %466 = vmatpush2.bf16.xpose.msra.mxu0 0
    %467 = vmatprep.subr.bf16.mxu0 0
    %468 = vmatpush2.bf16.xpose.msra.mxu0 0
    %469 = vmatprep.mubr.bf16.mxu0 0
    %470 = vmatmul.mubr.bf16.gmra.mxu0 %v414
    %v471 = vpop.f32.mrf.mxu0
    %v472 = vadd.f32 0.0, %v471
    %v473 = vpop.f32.mrf.mxu0
    %v474 = vpop.f32.mrf.mxu0
    %v475 = vadd.f32 0.0, %v474
    %v476 = vpop.f32.mrf.mxu0
    %477 = vmatprep.mubr.bf16.mxu0 0
    %478 = vmatmul.mubr.bf16.gmra.mxu0 %v417
    %v479 = vpop.f32.mrf.mxu0
    %v480 = vadd.f32 0.0, %v479
    %v481 = vpop.f32.mrf.mxu0
    %v482 = vpop.f32.mrf.mxu0
    %v483 = vadd.f32 0.0, %v482
    %v484 = vpop.f32.mrf.mxu0
    %485 = vmatprep.mubr.bf16.mxu0 0
    %486 = vmatmul.mubr.bf16.gmra.mxu0 %v420
    %v487 = vpop.f32.mrf.mxu0
    %v488 = vadd.f32 0.0, %v487
    %v489 = vpop.f32.mrf.mxu0
    %v490 = vpop.f32.mrf.mxu0
    %v491 = vadd.f32 0.0, %v490
    %v492 = vpop.f32.mrf.mxu0
    %493 = vmatprep.mubr.bf16.mxu0 0
    %494 = vmatmul.mubr.bf16.gmra.mxu0 %v423
    %v495 = vpop.f32.mrf.mxu0
    %v496 = vadd.f32 0.0, %v495
    %v497 = vpop.f32.mrf.mxu0
    %v498 = vpop.f32.mrf.mxu0
    %v499 = vadd.f32 0.0, %v498
    %v500 = vpop.f32.mrf.mxu0
    %501 = vdwg.mxu0
    %v502 = vmul.f32 %v472, 0.35355338
    %v503 = vmul.f32 %v475, 0.35355338
    %v504 = vmul.f32 %v480, 0.35355338
    %v505 = vmul.f32 %v483, 0.35355338
    %v506 = vmul.f32 %v488, 0.35355338
    %v507 = vmul.f32 %v491, 0.35355338
    %v508 = vmul.f32 %v496, 0.35355338
    %v509 = vmul.f32 %v499, 0.35355338
    %v510 = vsel %vm130, %v502, -1e+30
    %v511 = vsel %vm131, %v503, -1e+30
    %v512 = vsel %vm132, %v504, -1e+30
    %v513 = vsel %vm133, %v505, -1e+30
    %v514 = vsel %vm134, %v506, -1e+30
    %v515 = vsel %vm135, %v507, -1e+30
    %v516 = vsel %vm136, %v508, -1e+30
    %v517 = vsel %vm137, %v509, -1e+30
    %v518 = vsel %vm175, %v510, -inf
    %519 = vmax.xlane.f32.xlu0 %v518
    %v520 = vpop.xlane.xlu0 %519
    %v521 = vsel %vm175, %v511, -inf
    %522 = vmax.xlane.f32.xlu0 %v521
    %v523 = vpop.xlane.xlu0 %522
    %v524 = vsel %vm175, %v512, -inf
    %525 = vmax.xlane.f32.xlu0 %v524
    %v526 = vpop.xlane.xlu0 %525
    %v527 = vsel %vm175, %v513, -inf
    %528 = vmax.xlane.f32.xlu0 %v527
    %v529 = vpop.xlane.xlu0 %528
    %v530 = vsel %vm175, %v514, -inf
    %531 = vmax.xlane.f32.xlu0 %v530
    %v532 = vpop.xlane.xlu0 %531
    %v533 = vsel %vm175, %v515, -inf
    %534 = vmax.xlane.f32.xlu0 %v533
    %v535 = vpop.xlane.xlu0 %534
    %v536 = vsel %vm175, %v516, -inf
    %537 = vmax.xlane.f32.xlu0 %v536
    %v538 = vpop.xlane.xlu0 %537
    %v539 = vsel %vm175, %v517, -inf
    %540 = vmax.xlane.f32.xlu0 %v539
    %v541 = vpop.xlane.xlu0 %540
    %v542 = vsub.f32 %v510, %v520
    %v543 = vsub.f32 %v511, %v523
    %v544 = vsub.f32 %v512, %v526
    %v545 = vsub.f32 %v513, %v529
    %v546 = vsub.f32 %v514, %v532
    %v547 = vsub.f32 %v515, %v535
    %v548 = vsub.f32 %v516, %v538
    %v549 = vsub.f32 %v517, %v541
    %v550 = vmul.f32 %v542, 1.442695
    %v551 = vpow.pop %v550
    %v552 = vmul.f32 %v543, 1.442695
    %v553 = vpow.pop %v552
    %v554 = vmul.f32 %v544, 1.442695
    %v555 = vpow.pop %v554
    %v556 = vmul.f32 %v545, 1.442695
    %v557 = vpow.pop %v556
    %v558 = vmul.f32 %v546, 1.442695
    %v559 = vpow.pop %v558
    %v560 = vmul.f32 %v547, 1.442695
    %v561 = vpow.pop %v560
    %v562 = vmul.f32 %v548, 1.442695
    %v563 = vpow.pop %v562
    %v564 = vmul.f32 %v549, 1.442695
    %v565 = vpow.pop %v564
    %v566 = vsel %vm175, %v551, 0.0
    %567 = vadd.xlane.f32.xlu0 %v566
    %v568 = vpop.xlane.xlu0 %567
    %v569 = vsel %vm175, %v553, 0.0
    %570 = vadd.xlane.f32.xlu0 %v569
    %v571 = vpop.xlane.xlu0 %570
    %v572 = vsel %vm175, %v555, 0.0
    %573 = vadd.xlane.f32.xlu0 %v572
    %v574 = vpop.xlane.xlu0 %573
    %v575 = vsel %vm175, %v557, 0.0
    %576 = vadd.xlane.f32.xlu0 %v575
    %v577 = vpop.xlane.xlu0 %576
    %v578 = vsel %vm175, %v559, 0.0
    %579 = vadd.xlane.f32.xlu0 %v578
    %v580 = vpop.xlane.xlu0 %579
    %v581 = vsel %vm175, %v561, 0.0
    %582 = vadd.xlane.f32.xlu0 %v581
    %v583 = vpop.xlane.xlu0 %582
    %v584 = vsel %vm175, %v563, 0.0
    %585 = vadd.xlane.f32.xlu0 %v584
    %v586 = vpop.xlane.xlu0 %585
    %v587 = vsel %vm175, %v565, 0.0
    %588 = vadd.xlane.f32.xlu0 %v587
    %v589 = vpop.xlane.xlu0 %588
    %v590 = vrcp.pop %v568
    %v591 = vmul.f32 %v551, %v590
    %v592 = vrcp.pop %v571
    %v593 = vmul.f32 %v553, %v592
    %v594 = vrcp.pop %v574
    %v595 = vmul.f32 %v555, %v594
    %v596 = vrcp.pop %v577
    %v597 = vmul.f32 %v557, %v596
    %v598 = vrcp.pop %v580
    %v599 = vmul.f32 %v559, %v598
    %v600 = vrcp.pop %v583
    %v601 = vmul.f32 %v561, %v600
    %v602 = vrcp.pop %v586
    %v603 = vmul.f32 %v563, %v602
    %v604 = vrcp.pop %v589
    %v605 = vmul.f32 %v565, %v604
    %v606 = vpack.c.bf16 %v593, %v591
    %v607 = vpack.c.bf16 %v597, %v595
    %v608 = vpack.c.bf16 %v601, %v599
    %v609 = vpack.c.bf16 %v605, %v603
    %610 = vrot.lane.b32.xlu0 %v396, 64
    %v611 = vpop.permute.xlu0 %610
    %612 = vrot.lane.b32.xlu0 %v399, 64
    %v613 = vpop.permute.xlu0 %612
    %614 = vrot.lane.b32.xlu0 %v401, 64
    %v615 = vpop.permute.xlu0 %614
    %616 = vrot.lane.b32.xlu0 %v403, 64
    %v617 = vpop.permute.xlu0 %616
    %v623 = vsel %vm175, %v606, 0
    %v626 = vsel %vm175, %v607, 0
    %v629 = vsel %vm175, %v608, 0
    %v632 = vsel %vm175, %v609, 0
    %634 = vmatprep.subr.bf16.mxu0 0
    %635 = vmatpush1.bf16.msra.mxu0 0
    %636 = vmatprep.subr.bf16.mxu0 0
    %637 = vmatpush1.bf16.msra.mxu0 0
    %638 = vmatprep.subr.bf16.mxu0 0
    %639 = vmatpush1.bf16.msra.mxu0 0
    %640 = vmatprep.subr.bf16.mxu0 0
    %641 = vmatpush1.bf16.msra.mxu0 0
    %642 = vmatprep.subr.bf16.mxu0 0
    %643 = vmatpush1.bf16.msra.mxu0 %v617
    %644 = vmatprep.subr.bf16.mxu0 0
    %645 = vmatpush1.bf16.msra.mxu0 %v615
    %646 = vmatprep.subr.bf16.mxu0 0
    %647 = vmatpush1.bf16.msra.mxu0 %v613
    %648 = vmatprep.subr.bf16.mxu0 0
    %649 = vmatpush1.bf16.msra.mxu0 %v611
    %650 = vmatprep.subr.bf16.mxu0 0
    %651 = vmatpush2.bf16.msra.mxu0 0
    %652 = vmatprep.subr.bf16.mxu0 0
    %653 = vmatpush2.bf16.msra.mxu0 0
    %654 = vmatprep.subr.bf16.mxu0 0
    %655 = vmatpush2.bf16.msra.mxu0 0
    %656 = vmatprep.subr.bf16.mxu0 0
    %657 = vmatpush2.bf16.msra.mxu0 0
    %658 = vmatprep.subr.bf16.mxu0 0
    %659 = vmatpush2.bf16.msra.mxu0 0
    %660 = vmatprep.subr.bf16.mxu0 0
    %661 = vmatpush2.bf16.msra.mxu0 0
    %662 = vmatprep.subr.bf16.mxu0 0
    %663 = vmatpush2.bf16.msra.mxu0 0
    %664 = vmatprep.subr.bf16.mxu0 0
    %665 = vmatpush2.bf16.msra.mxu0 0
    %666 = vmatprep.mubr.bf16.mxu0 0
    %667 = vmatmul.mubr.bf16.gmra.mxu0 %v623
    %v668 = vpop.f32.mrf.mxu0
    %v669 = vadd.f32 0.0, %v668
    %v670 = vpop.f32.mrf.mxu0
    %v671 = vpop.f32.mrf.mxu0
    %v672 = vadd.f32 0.0, %v671
    %v673 = vpop.f32.mrf.mxu0
    %674 = vmatprep.mubr.bf16.mxu0 0
    %675 = vmatmul.mubr.bf16.gmra.mxu0 %v626
    %v676 = vpop.f32.mrf.mxu0
    %v677 = vadd.f32 0.0, %v676
    %v678 = vpop.f32.mrf.mxu0
    %v679 = vpop.f32.mrf.mxu0
    %v680 = vadd.f32 0.0, %v679
    %v681 = vpop.f32.mrf.mxu0
    %682 = vmatprep.mubr.bf16.mxu0 0
    %683 = vmatmul.mubr.bf16.gmra.mxu0 %v629
    %v684 = vpop.f32.mrf.mxu0
    %v685 = vadd.f32 0.0, %v684
    %v686 = vpop.f32.mrf.mxu0
    %v687 = vpop.f32.mrf.mxu0
    %v688 = vadd.f32 0.0, %v687
    %v689 = vpop.f32.mrf.mxu0
    %690 = vmatprep.mubr.bf16.mxu0 0
    %691 = vmatmul.mubr.bf16.gmra.mxu0 %v632
    %v692 = vpop.f32.mrf.mxu0
    %v693 = vadd.f32 0.0, %v692
    %v694 = vpop.f32.mrf.mxu0
    %v695 = vpop.f32.mrf.mxu0
    %v696 = vadd.f32 0.0, %v695
    %v697 = vpop.f32.mrf.mxu0
    %698 = vdwg.mxu0
    %701 = vrot.lane.b32.xlu0 %v677, 8
    %v702 = vpop.permute.xlu0 %701
    %703 = vrot.lane.b32.xlu0 %v680, 8
    %v704 = vpop.permute.xlu0 %703
    %709 = vrot.lane.b32.xlu0 %v685, 16
    %v710 = vpop.permute.xlu0 %709
    %711 = vrot.lane.b32.xlu0 %v688, 16
    %v712 = vpop.permute.xlu0 %711
    %717 = vrot.lane.b32.xlu0 %v693, 24
    %v718 = vpop.permute.xlu0 %717
    %719 = vrot.lane.b32.xlu0 %v696, 24
    %v720 = vpop.permute.xlu0 %719
    %v723 = vsel %vm412, %v669, %v702
    %v724 = vsel %vm412, %v672, %v704
    %vm725 = vcmask 130048
    %v726 = vsel %vm725, %v723, %v710
    %v727 = vsel %vm725, %v724, %v712
    %vm728 = vcmask 195584
    %v729 = vsel %vm728, %v726, %v718
    %v730 = vsel %vm728, %v727, %v720
    %v731 = vpack.c.bf16 %v730, %v729
    %v736 = vunpack.c.l.b16 %v60
    %v737 = vunpack.c.l.b16 %v61
    %v738 = vunpack.c.l.b16 %v62
    %v739 = vunpack.c.l.b16 %v63
    %v740 = vpack.c.b16 %v737, %v736
    %v741 = vpack.c.b16 %v739, %v738
    %v745 = vsel %vm220, %v731, 0
    %747 = vmatprep.subr.bf16.mxu0 0
    %748 = vmatpush1.bf16.msra.mxu0 0
    %749 = vmatprep.subr.bf16.mxu0 0
    %750 = vmatpush1.bf16.msra.mxu0 0
    %751 = vmatprep.subr.bf16.mxu0 0
    %752 = vmatpush1.bf16.msra.mxu0 0
    %753 = vmatprep.subr.bf16.mxu0 0
    %754 = vmatpush1.bf16.msra.mxu0 0
    %755 = vmatprep.subr.bf16.mxu0 0
    %756 = vmatpush1.bf16.msra.mxu0 0
    %757 = vmatprep.subr.bf16.mxu0 0
    %758 = vmatpush1.bf16.msra.mxu0 0
    %759 = vmatprep.subr.bf16.mxu0 0
    %760 = vmatpush1.bf16.msra.mxu0 %v741
    %761 = vmatprep.subr.bf16.mxu0 0
    %762 = vmatpush1.bf16.msra.mxu0 %v740
    %763 = vmatprep.subr.bf16.mxu0 0
    %764 = vmatpush2.bf16.msra.mxu0 0
    %765 = vmatprep.subr.bf16.mxu0 0
    %766 = vmatpush2.bf16.msra.mxu0 0
    %767 = vmatprep.subr.bf16.mxu0 0
    %768 = vmatpush2.bf16.msra.mxu0 0
    %769 = vmatprep.subr.bf16.mxu0 0
    %770 = vmatpush2.bf16.msra.mxu0 0
    %771 = vmatprep.subr.bf16.mxu0 0
    %772 = vmatpush2.bf16.msra.mxu0 0
    %773 = vmatprep.subr.bf16.mxu0 0
    %774 = vmatpush2.bf16.msra.mxu0 0
    %775 = vmatprep.subr.bf16.mxu0 0
    %776 = vmatpush2.bf16.msra.mxu0 0
    %777 = vmatprep.subr.bf16.mxu0 0
    %778 = vmatpush2.bf16.msra.mxu0 0
    %779 = vmatprep.mubr.bf16.mxu0 0
    %780 = vmatmul.mubr.bf16.gmra.mxu0 %v745
    %v781 = vpop.f32.mrf.mxu0
    %v782 = vadd.f32 %v101, %v781
    %v783 = vpop.f32.mrf.mxu0
    %v784 = vpop.f32.mrf.mxu0
    %v785 = vadd.f32 %v101, %v784
    %v786 = vpop.f32.mrf.mxu0
    %787 = vdwg.mxu0
    %v788 = vadd.f32 %v303, %v782
    %v789 = vadd.f32 %v306, %v785
    %v790 = vsel %vm220, %v788, 0.0
    %791 = vadd.xlane.f32.xlu0 %v790
    %v792 = vpop.xlane.xlu0 %791
    %v793 = vsel %vm220, %v789, 0.0
    %794 = vadd.xlane.f32.xlu0 %v793
    %v795 = vpop.xlane.xlu0 %794
    %v796 = vmul.f32 %v792, %v227
    %v797 = vmul.f32 %v795, %v227
    %v798 = vsub.f32 %v788, %v796
    %v799 = vsub.f32 %v789, %v797
    %v800 = vmul.f32 %v798, %v798
    %v801 = vmul.f32 %v799, %v799
    %v802 = vsel %vm220, %v800, 0.0
    %803 = vadd.xlane.f32.xlu0 %v802
    %v804 = vpop.xlane.xlu0 %803
    %v805 = vsel %vm220, %v801, 0.0
    %806 = vadd.xlane.f32.xlu0 %v805
    %v807 = vpop.xlane.xlu0 %806
    %v808 = vmul.f32 %v804, %v227
    %v809 = vmul.f32 %v807, %v227
    %v810 = vadd.f32 %v808, 1e-05
    %v811 = vadd.f32 %v809, 1e-05
    %v812 = vrsqrt.pop %v810
    %v813 = vrsqrt.pop %v811
    %v814 = vmul.f32 %v798, %v812
    %v815 = vmul.f32 %v799, %v813
    %v816 = vmul.f32 %v814, %v102
    %v817 = vmul.f32 %v815, %v102
    %v818 = vadd.f32 %v816, %v103
    %v819 = vadd.f32 %v817, %v103
    %v820 = vpack.c.bf16 %v819, %v818
    %v825 = vunpack.c.l.b16 %v64
    %v826 = vunpack.c.l.b16 %v65
    %v827 = vunpack.c.l.b16 %v66
    %v828 = vunpack.c.l.b16 %v67
    %v829 = vpack.c.b16 %v826, %v825
    %v830 = vpack.c.b16 %v828, %v827
    %v834 = vsel %vm220, %v820, 0
    %836 = vmatprep.subr.bf16.mxu0 0
    %837 = vmatpush1.bf16.msra.mxu0 0
    %838 = vmatprep.subr.bf16.mxu0 0
    %839 = vmatpush1.bf16.msra.mxu0 0
    %840 = vmatprep.subr.bf16.mxu0 0
    %841 = vmatpush1.bf16.msra.mxu0 0
    %842 = vmatprep.subr.bf16.mxu0 0
    %843 = vmatpush1.bf16.msra.mxu0 0
    %844 = vmatprep.subr.bf16.mxu0 0
    %845 = vmatpush1.bf16.msra.mxu0 0
    %846 = vmatprep.subr.bf16.mxu0 0
    %847 = vmatpush1.bf16.msra.mxu0 0
    %848 = vmatprep.subr.bf16.mxu0 0
    %849 = vmatpush1.bf16.msra.mxu0 %v830
    %850 = vmatprep.subr.bf16.mxu0 0
    %851 = vmatpush1.bf16.msra.mxu0 %v829
    %852 = vmatprep.subr.bf16.mxu0 0
    %853 = vmatpush2.bf16.msra.mxu0 0
    %854 = vmatprep.subr.bf16.mxu0 0
    %855 = vmatpush2.bf16.msra.mxu0 0
    %856 = vmatprep.subr.bf16.mxu0 0
    %857 = vmatpush2.bf16.msra.mxu0 0
    %858 = vmatprep.subr.bf16.mxu0 0
    %859 = vmatpush2.bf16.msra.mxu0 0
    %860 = vmatprep.subr.bf16.mxu0 0
    %861 = vmatpush2.bf16.msra.mxu0 0
    %862 = vmatprep.subr.bf16.mxu0 0
    %863 = vmatpush2.bf16.msra.mxu0 0
    %864 = vmatprep.subr.bf16.mxu0 0
    %865 = vmatpush2.bf16.msra.mxu0 0
    %866 = vmatprep.subr.bf16.mxu0 0
    %867 = vmatpush2.bf16.msra.mxu0 0
    %868 = vmatprep.mubr.bf16.mxu0 0
    %869 = vmatmul.mubr.bf16.gmra.mxu0 %v834
    %v870 = vpop.f32.mrf.mxu0
    %v871 = vadd.f32 0.0, %v870
    %v872 = vpop.f32.mrf.mxu0
    %v873 = vpop.f32.mrf.mxu0
    %v874 = vadd.f32 0.0, %v873
    %v875 = vpop.f32.mrf.mxu0
    %876 = vdwg.mxu0
    %v877 = vpack.c.bf16 %v874, %v871
    %879 = vrot.lane.b32.xlu0 %v877, 120
    %v880 = vpop.permute.xlu0 %879
    %881 = vrot.lane.b32.xlu0 %v877, 112
    %v882 = vpop.permute.xlu0 %881
    %883 = vrot.lane.b32.xlu0 %v877, 104
    %v884 = vpop.permute.xlu0 %883
    %885 = vrot.lane.b32.xlu0 %v877, 96
    %v886 = vpop.permute.xlu0 %885
    %887 = vrot.lane.b32.xlu0 %v880, 96
    %v888 = vpop.permute.xlu0 %887
    %889 = vrot.lane.b32.xlu0 %v882, 96
    %v890 = vpop.permute.xlu0 %889
    %891 = vrot.lane.b32.xlu0 %v884, 96
    %v892 = vpop.permute.xlu0 %891
    %v894 = vsel %vm412, %v877, 0
    %v897 = vsel %vm412, %v880, 0
    %v900 = vsel %vm412, %v882, 0
    %v903 = vsel %vm412, %v884, 0
    %v906 = vsel %vm412, %v886, 0
    %v909 = vsel %vm412, %v888, 0
    %v912 = vsel %vm412, %v890, 0
    %v915 = vsel %vm412, %v892, 0
    %917 = vmatprep.subr.bf16.mxu0 0
    %918 = vmatpush1.bf16.xpose.msra.mxu0 0
    %919 = vmatprep.subr.bf16.mxu0 0
    %920 = vmatpush1.bf16.xpose.msra.mxu0 0
    %921 = vmatprep.subr.bf16.mxu0 0
    %922 = vmatpush1.bf16.xpose.msra.mxu0 0
    %923 = vmatprep.subr.bf16.mxu0 0
    %924 = vmatpush1.bf16.xpose.msra.mxu0 0
    %925 = vmatprep.subr.bf16.mxu0 0
    %926 = vmatpush1.bf16.xpose.msra.mxu0 %v915
    %927 = vmatprep.subr.bf16.mxu0 0
    %928 = vmatpush1.bf16.xpose.msra.mxu0 %v912
    %929 = vmatprep.subr.bf16.mxu0 0
    %930 = vmatpush1.bf16.xpose.msra.mxu0 %v909
    %931 = vmatprep.subr.bf16.mxu0 0
    %932 = vmatpush1.bf16.xpose.msra.mxu0 %v906
    %933 = vmatprep.subr.bf16.mxu0 0
    %934 = vmatpush2.bf16.xpose.msra.mxu0 0
    %935 = vmatprep.subr.bf16.mxu0 0
    %936 = vmatpush2.bf16.xpose.msra.mxu0 0
    %937 = vmatprep.subr.bf16.mxu0 0
    %938 = vmatpush2.bf16.xpose.msra.mxu0 0
    %939 = vmatprep.subr.bf16.mxu0 0
    %940 = vmatpush2.bf16.xpose.msra.mxu0 0
    %941 = vmatprep.subr.bf16.mxu0 0
    %942 = vmatpush2.bf16.xpose.msra.mxu0 0
    %943 = vmatprep.subr.bf16.mxu0 0
    %944 = vmatpush2.bf16.xpose.msra.mxu0 0
    %945 = vmatprep.subr.bf16.mxu0 0
    %946 = vmatpush2.bf16.xpose.msra.mxu0 0
    %947 = vmatprep.subr.bf16.mxu0 0
    %948 = vmatpush2.bf16.xpose.msra.mxu0 0
    %949 = vmatprep.mubr.bf16.mxu0 0
    %950 = vmatmul.mubr.bf16.gmra.mxu0 %v894
    %v951 = vpop.f32.mrf.mxu0
    %v952 = vadd.f32 0.0, %v951
    %v953 = vpop.f32.mrf.mxu0
    %v954 = vpop.f32.mrf.mxu0
    %v955 = vadd.f32 0.0, %v954
    %v956 = vpop.f32.mrf.mxu0
    %957 = vmatprep.mubr.bf16.mxu0 0
    %958 = vmatmul.mubr.bf16.gmra.mxu0 %v897
    %v959 = vpop.f32.mrf.mxu0
    %v960 = vadd.f32 0.0, %v959
    %v961 = vpop.f32.mrf.mxu0
    %v962 = vpop.f32.mrf.mxu0
    %v963 = vadd.f32 0.0, %v962
    %v964 = vpop.f32.mrf.mxu0
    %965 = vmatprep.mubr.bf16.mxu0 0
    %966 = vmatmul.mubr.bf16.gmra.mxu0 %v900
    %v967 = vpop.f32.mrf.mxu0
    %v968 = vadd.f32 0.0, %v967
    %v969 = vpop.f32.mrf.mxu0
    %v970 = vpop.f32.mrf.mxu0
    %v971 = vadd.f32 0.0, %v970
    %v972 = vpop.f32.mrf.mxu0
    %973 = vmatprep.mubr.bf16.mxu0 0
    %974 = vmatmul.mubr.bf16.gmra.mxu0 %v903
    %v975 = vpop.f32.mrf.mxu0
    %v976 = vadd.f32 0.0, %v975
    %v977 = vpop.f32.mrf.mxu0
    %v978 = vpop.f32.mrf.mxu0
    %v979 = vadd.f32 0.0, %v978
    %v980 = vpop.f32.mrf.mxu0
    %981 = vdwg.mxu0
    %v982 = vmul.f32 %v952, 0.35355338
    %v983 = vmul.f32 %v955, 0.35355338
    %v984 = vmul.f32 %v960, 0.35355338
    %v985 = vmul.f32 %v963, 0.35355338
    %v986 = vmul.f32 %v968, 0.35355338
    %v987 = vmul.f32 %v971, 0.35355338
    %v988 = vmul.f32 %v976, 0.35355338
    %v989 = vmul.f32 %v979, 0.35355338
    %v990 = vsel %vm130, %v982, -1e+30
    %v991 = vsel %vm131, %v983, -1e+30
    %v992 = vsel %vm132, %v984, -1e+30
    %v993 = vsel %vm133, %v985, -1e+30
    %v994 = vsel %vm134, %v986, -1e+30
    %v995 = vsel %vm135, %v987, -1e+30
    %v996 = vsel %vm136, %v988, -1e+30
    %v997 = vsel %vm137, %v989, -1e+30
    %v998 = vsel %vm175, %v990, -inf
    %999 = vmax.xlane.f32.xlu0 %v998
    %v1000 = vpop.xlane.xlu0 %999
    %v1001 = vsel %vm175, %v991, -inf
    %1002 = vmax.xlane.f32.xlu0 %v1001
    %v1003 = vpop.xlane.xlu0 %1002
    %v1004 = vsel %vm175, %v992, -inf
    %1005 = vmax.xlane.f32.xlu0 %v1004
    %v1006 = vpop.xlane.xlu0 %1005
    %v1007 = vsel %vm175, %v993, -inf
    %1008 = vmax.xlane.f32.xlu0 %v1007
    %v1009 = vpop.xlane.xlu0 %1008
    %v1010 = vsel %vm175, %v994, -inf
    %1011 = vmax.xlane.f32.xlu0 %v1010
    %v1012 = vpop.xlane.xlu0 %1011
    %v1013 = vsel %vm175, %v995, -inf
    %1014 = vmax.xlane.f32.xlu0 %v1013
    %v1015 = vpop.xlane.xlu0 %1014
    %v1016 = vsel %vm175, %v996, -inf
    %1017 = vmax.xlane.f32.xlu0 %v1016
    %v1018 = vpop.xlane.xlu0 %1017
    %v1019 = vsel %vm175, %v997, -inf
    %1020 = vmax.xlane.f32.xlu0 %v1019
    %v1021 = vpop.xlane.xlu0 %1020
    %v1022 = vsub.f32 %v990, %v1000
    %v1023 = vsub.f32 %v991, %v1003
    %v1024 = vsub.f32 %v992, %v1006
    %v1025 = vsub.f32 %v993, %v1009
    %v1026 = vsub.f32 %v994, %v1012
    %v1027 = vsub.f32 %v995, %v1015
    %v1028 = vsub.f32 %v996, %v1018
    %v1029 = vsub.f32 %v997, %v1021
    %v1030 = vmul.f32 %v1022, 1.442695
    %v1031 = vpow.pop %v1030
    %v1032 = vmul.f32 %v1023, 1.442695
    %v1033 = vpow.pop %v1032
    %v1034 = vmul.f32 %v1024, 1.442695
    %v1035 = vpow.pop %v1034
    %v1036 = vmul.f32 %v1025, 1.442695
    %v1037 = vpow.pop %v1036
    %v1038 = vmul.f32 %v1026, 1.442695
    %v1039 = vpow.pop %v1038
    %v1040 = vmul.f32 %v1027, 1.442695
    %v1041 = vpow.pop %v1040
    %v1042 = vmul.f32 %v1028, 1.442695
    %v1043 = vpow.pop %v1042
    %v1044 = vmul.f32 %v1029, 1.442695
    %v1045 = vpow.pop %v1044
    %v1046 = vsel %vm175, %v1031, 0.0
    %1047 = vadd.xlane.f32.xlu0 %v1046
    %v1048 = vpop.xlane.xlu0 %1047
    %v1049 = vsel %vm175, %v1033, 0.0
    %1050 = vadd.xlane.f32.xlu0 %v1049
    %v1051 = vpop.xlane.xlu0 %1050
    %v1052 = vsel %vm175, %v1035, 0.0
    %1053 = vadd.xlane.f32.xlu0 %v1052
    %v1054 = vpop.xlane.xlu0 %1053
    %v1055 = vsel %vm175, %v1037, 0.0
    %1056 = vadd.xlane.f32.xlu0 %v1055
    %v1057 = vpop.xlane.xlu0 %1056
    %v1058 = vsel %vm175, %v1039, 0.0
    %1059 = vadd.xlane.f32.xlu0 %v1058
    %v1060 = vpop.xlane.xlu0 %1059
    %v1061 = vsel %vm175, %v1041, 0.0
    %1062 = vadd.xlane.f32.xlu0 %v1061
    %v1063 = vpop.xlane.xlu0 %1062
    %v1064 = vsel %vm175, %v1043, 0.0
    %1065 = vadd.xlane.f32.xlu0 %v1064
    %v1066 = vpop.xlane.xlu0 %1065
    %v1067 = vsel %vm175, %v1045, 0.0
    %1068 = vadd.xlane.f32.xlu0 %v1067
    %v1069 = vpop.xlane.xlu0 %1068
    %v1070 = vrcp.pop %v1048
    %v1071 = vmul.f32 %v1031, %v1070
    %v1072 = vrcp.pop %v1051
    %v1073 = vmul.f32 %v1033, %v1072
    %v1074 = vrcp.pop %v1054
    %v1075 = vmul.f32 %v1035, %v1074
    %v1076 = vrcp.pop %v1057
    %v1077 = vmul.f32 %v1037, %v1076
    %v1078 = vrcp.pop %v1060
    %v1079 = vmul.f32 %v1039, %v1078
    %v1080 = vrcp.pop %v1063
    %v1081 = vmul.f32 %v1041, %v1080
    %v1082 = vrcp.pop %v1066
    %v1083 = vmul.f32 %v1043, %v1082
    %v1084 = vrcp.pop %v1069
    %v1085 = vmul.f32 %v1045, %v1084
    %v1086 = vpack.c.bf16 %v1073, %v1071
    %v1087 = vpack.c.bf16 %v1077, %v1075
    %v1088 = vpack.c.bf16 %v1081, %v1079
    %v1089 = vpack.c.bf16 %v1085, %v1083
    %1090 = vrot.lane.b32.xlu0 %v877, 64
    %v1091 = vpop.permute.xlu0 %1090
    %1092 = vrot.lane.b32.xlu0 %v880, 64
    %v1093 = vpop.permute.xlu0 %1092
    %1094 = vrot.lane.b32.xlu0 %v882, 64
    %v1095 = vpop.permute.xlu0 %1094
    %1096 = vrot.lane.b32.xlu0 %v884, 64
    %v1097 = vpop.permute.xlu0 %1096
    %v1103 = vsel %vm175, %v1086, 0
    %v1106 = vsel %vm175, %v1087, 0
    %v1109 = vsel %vm175, %v1088, 0
    %v1112 = vsel %vm175, %v1089, 0
    %1114 = vmatprep.subr.bf16.mxu0 0
    %1115 = vmatpush1.bf16.msra.mxu0 0
    %1116 = vmatprep.subr.bf16.mxu0 0
    %1117 = vmatpush1.bf16.msra.mxu0 0
    %1118 = vmatprep.subr.bf16.mxu0 0
    %1119 = vmatpush1.bf16.msra.mxu0 0
    %1120 = vmatprep.subr.bf16.mxu0 0
    %1121 = vmatpush1.bf16.msra.mxu0 0
    %1122 = vmatprep.subr.bf16.mxu0 0
    %1123 = vmatpush1.bf16.msra.mxu0 %v1097
    %1124 = vmatprep.subr.bf16.mxu0 0
    %1125 = vmatpush1.bf16.msra.mxu0 %v1095
    %1126 = vmatprep.subr.bf16.mxu0 0
    %1127 = vmatpush1.bf16.msra.mxu0 %v1093
    %1128 = vmatprep.subr.bf16.mxu0 0
    %1129 = vmatpush1.bf16.msra.mxu0 %v1091
    %1130 = vmatprep.subr.bf16.mxu0 0
    %1131 = vmatpush2.bf16.msra.mxu0 0
    %1132 = vmatprep.subr.bf16.mxu0 0
    %1133 = vmatpush2.bf16.msra.mxu0 0
    %1134 = vmatprep.subr.bf16.mxu0 0
    %1135 = vmatpush2.bf16.msra.mxu0 0
    %1136 = vmatprep.subr.bf16.mxu0 0
    %1137 = vmatpush2.bf16.msra.mxu0 0
    %1138 = vmatprep.subr.bf16.mxu0 0
    %1139 = vmatpush2.bf16.msra.mxu0 0
    %1140 = vmatprep.subr.bf16.mxu0 0
    %1141 = vmatpush2.bf16.msra.mxu0 0
    %1142 = vmatprep.subr.bf16.mxu0 0
    %1143 = vmatpush2.bf16.msra.mxu0 0
    %1144 = vmatprep.subr.bf16.mxu0 0
    %1145 = vmatpush2.bf16.msra.mxu0 0
    %1146 = vmatprep.mubr.bf16.mxu0 0
    %1147 = vmatmul.mubr.bf16.gmra.mxu0 %v1103
    %v1148 = vpop.f32.mrf.mxu0
    %v1149 = vadd.f32 0.0, %v1148
    %v1150 = vpop.f32.mrf.mxu0
    %v1151 = vpop.f32.mrf.mxu0
    %v1152 = vadd.f32 0.0, %v1151
    %v1153 = vpop.f32.mrf.mxu0
    %1154 = vmatprep.mubr.bf16.mxu0 0
    %1155 = vmatmul.mubr.bf16.gmra.mxu0 %v1106
    %v1156 = vpop.f32.mrf.mxu0
    %v1157 = vadd.f32 0.0, %v1156
    %v1158 = vpop.f32.mrf.mxu0
    %v1159 = vpop.f32.mrf.mxu0
    %v1160 = vadd.f32 0.0, %v1159
    %v1161 = vpop.f32.mrf.mxu0
    %1162 = vmatprep.mubr.bf16.mxu0 0
    %1163 = vmatmul.mubr.bf16.gmra.mxu0 %v1109
    %v1164 = vpop.f32.mrf.mxu0
    %v1165 = vadd.f32 0.0, %v1164
    %v1166 = vpop.f32.mrf.mxu0
    %v1167 = vpop.f32.mrf.mxu0
    %v1168 = vadd.f32 0.0, %v1167
    %v1169 = vpop.f32.mrf.mxu0
    %1170 = vmatprep.mubr.bf16.mxu0 0
    %1171 = vmatmul.mubr.bf16.gmra.mxu0 %v1112
    %v1172 = vpop.f32.mrf.mxu0
    %v1173 = vadd.f32 0.0, %v1172
    %v1174 = vpop.f32.mrf.mxu0
    %v1175 = vpop.f32.mrf.mxu0
    %v1176 = vadd.f32 0.0, %v1175
    %v1177 = vpop.f32.mrf.mxu0
    %1178 = vdwg.mxu0
    %1181 = vrot.lane.b32.xlu0 %v1157, 8
    %v1182 = vpop.permute.xlu0 %1181
    %1183 = vrot.lane.b32.xlu0 %v1160, 8
    %v1184 = vpop.permute.xlu0 %1183
    %1189 = vrot.lane.b32.xlu0 %v1165, 16
    %v1190 = vpop.permute.xlu0 %1189
    %1191 = vrot.lane.b32.xlu0 %v1168, 16
    %v1192 = vpop.permute.xlu0 %1191
    %1197 = vrot.lane.b32.xlu0 %v1173, 24
    %v1198 = vpop.permute.xlu0 %1197
    %1199 = vrot.lane.b32.xlu0 %v1176, 24
    %v1200 = vpop.permute.xlu0 %1199
    %v1203 = vsel %vm412, %v1149, %v1182
    %v1204 = vsel %vm412, %v1152, %v1184
    %v1205 = vsel %vm725, %v1203, %v1190
    %v1206 = vsel %vm725, %v1204, %v1192
    %v1207 = vsel %vm728, %v1205, %v1198
    %v1208 = vsel %vm728, %v1206, %v1200
    %v1209 = vpack.c.bf16 %v1208, %v1207
    %v1214 = vunpack.c.l.b16 %v68
    %v1215 = vunpack.c.l.b16 %v69
    %v1216 = vunpack.c.l.b16 %v70
    %v1217 = vunpack.c.l.b16 %v71
    %v1218 = vpack.c.b16 %v1215, %v1214
    %v1219 = vpack.c.b16 %v1217, %v1216
    %v1223 = vsel %vm220, %v1209, 0
    %1225 = vmatprep.subr.bf16.mxu0 0
    %1226 = vmatpush1.bf16.msra.mxu0 0
    %1227 = vmatprep.subr.bf16.mxu0 0
    %1228 = vmatpush1.bf16.msra.mxu0 0
    %1229 = vmatprep.subr.bf16.mxu0 0
    %1230 = vmatpush1.bf16.msra.mxu0 0
    %1231 = vmatprep.subr.bf16.mxu0 0
    %1232 = vmatpush1.bf16.msra.mxu0 0
    %1233 = vmatprep.subr.bf16.mxu0 0
    %1234 = vmatpush1.bf16.msra.mxu0 0
    %1235 = vmatprep.subr.bf16.mxu0 0
    %1236 = vmatpush1.bf16.msra.mxu0 0
    %1237 = vmatprep.subr.bf16.mxu0 0
    %1238 = vmatpush1.bf16.msra.mxu0 %v1219
    %1239 = vmatprep.subr.bf16.mxu0 0
    %1240 = vmatpush1.bf16.msra.mxu0 %v1218
    %1241 = vmatprep.subr.bf16.mxu0 0
    %1242 = vmatpush2.bf16.msra.mxu0 0
    %1243 = vmatprep.subr.bf16.mxu0 0
    %1244 = vmatpush2.bf16.msra.mxu0 0
    %1245 = vmatprep.subr.bf16.mxu0 0
    %1246 = vmatpush2.bf16.msra.mxu0 0
    %1247 = vmatprep.subr.bf16.mxu0 0
    %1248 = vmatpush2.bf16.msra.mxu0 0
    %1249 = vmatprep.subr.bf16.mxu0 0
    %1250 = vmatpush2.bf16.msra.mxu0 0
    %1251 = vmatprep.subr.bf16.mxu0 0
    %1252 = vmatpush2.bf16.msra.mxu0 0
    %1253 = vmatprep.subr.bf16.mxu0 0
    %1254 = vmatpush2.bf16.msra.mxu0 0
    %1255 = vmatprep.subr.bf16.mxu0 0
    %1256 = vmatpush2.bf16.msra.mxu0 0
    %1257 = vmatprep.mubr.bf16.mxu0 0
    %1258 = vmatmul.mubr.bf16.gmra.mxu0 %v1223
    %v1259 = vpop.f32.mrf.mxu0
    %v1260 = vadd.f32 %v104, %v1259
    %v1261 = vpop.f32.mrf.mxu0
    %v1262 = vpop.f32.mrf.mxu0
    %v1263 = vadd.f32 %v104, %v1262
    %v1264 = vpop.f32.mrf.mxu0
    %1265 = vdwg.mxu0
    %v1266 = vadd.f32 %v788, %v1260
    %v1267 = vadd.f32 %v789, %v1263
    %v1268 = vsel %vm220, %v1266, 0.0
    %1269 = vadd.xlane.f32.xlu0 %v1268
    %v1270 = vpop.xlane.xlu0 %1269
    %v1271 = vsel %vm220, %v1267, 0.0
    %1272 = vadd.xlane.f32.xlu0 %v1271
    %v1273 = vpop.xlane.xlu0 %1272
    %v1274 = vmul.f32 %v1270, %v227
    %v1275 = vmul.f32 %v1273, %v227
    %v1276 = vsub.f32 %v1266, %v1274
    %v1277 = vsub.f32 %v1267, %v1275
    %v1278 = vmul.f32 %v1276, %v1276
    %v1279 = vmul.f32 %v1277, %v1277
    %v1280 = vsel %vm220, %v1278, 0.0
    %1281 = vadd.xlane.f32.xlu0 %v1280
    %v1282 = vpop.xlane.xlu0 %1281
    %v1283 = vsel %vm220, %v1279, 0.0
    %1284 = vadd.xlane.f32.xlu0 %v1283
    %v1285 = vpop.xlane.xlu0 %1284
    %v1286 = vmul.f32 %v1282, %v227
    %v1287 = vmul.f32 %v1285, %v227
    %v1288 = vadd.f32 %v1286, 1e-05
    %v1289 = vadd.f32 %v1287, 1e-05
    %v1290 = vrsqrt.pop %v1288
    %v1291 = vrsqrt.pop %v1289
    %v1292 = vmul.f32 %v1276, %v1290
    %v1293 = vmul.f32 %v1277, %v1291
    %v1294 = vmul.f32 %v1292, %v105
    %v1295 = vmul.f32 %v1293, %v105
    %v1296 = vadd.f32 %v1294, %v106
    %v1297 = vadd.f32 %v1295, %v106
    %v1298 = vpack.c.bf16 %v1297, %v1296
    %v1300 = vlaneseq
    %v1301 = vshrl.u32 %v1300, 7
    %v1302 = vsub.s32 0, %v1301
    %v1303 = vrot.slane %v108, %v1302
    %v1304 = vlaneseq
    %v1305 = vshrl.u32 %v1304, 7
    %v1306 = vsub.s32 1, %v1305
    %v1307 = vrot.slane %v108, %v1306
    %v1314 = vunpack.c.l.b16 %v72
    %v1315 = vunpack.c.h.b16 %v72
    %v1316 = vunpack.c.l.b16 %v73
    %v1317 = vunpack.c.h.b16 %v73
    %v1318 = vunpack.c.l.b16 %v74
    %v1319 = vunpack.c.h.b16 %v74
    %v1320 = vunpack.c.l.b16 %v75
    %v1321 = vunpack.c.h.b16 %v75
    %v1322 = vpack.c.b16 %v1316, %v1314
    %v1323 = vpack.c.b16 %v1317, %v1315
    %v1324 = vpack.c.b16 %v1320, %v1318
    %v1325 = vpack.c.b16 %v1321, %v1319
    %v1331 = vsel %vm220, %v1298, 0
    %1333 = vmatprep.subr.bf16.mxu0 0
    %1334 = vmatpush1.bf16.msra.mxu0 0
    %1335 = vmatprep.subr.bf16.mxu0 0
    %1336 = vmatpush1.bf16.msra.mxu0 0
    %1337 = vmatprep.subr.bf16.mxu0 0
    %1338 = vmatpush1.bf16.msra.mxu0 0
    %1339 = vmatprep.subr.bf16.mxu0 0
    %1340 = vmatpush1.bf16.msra.mxu0 0
    %1341 = vmatprep.subr.bf16.mxu0 0
    %1342 = vmatpush1.bf16.msra.mxu0 0
    %1343 = vmatprep.subr.bf16.mxu0 0
    %1344 = vmatpush1.bf16.msra.mxu0 0
    %1345 = vmatprep.subr.bf16.mxu0 %v1325
    %1346 = vmatpush1.bf16.msra.mxu0 %v1324
    %1347 = vmatprep.subr.bf16.mxu0 %v1323
    %1348 = vmatpush1.bf16.msra.mxu0 %v1322
    %1349 = vmatprep.subr.bf16.mxu0 0
    %1350 = vmatpush2.bf16.msra.mxu0 0
    %1351 = vmatprep.subr.bf16.mxu0 0
    %1352 = vmatpush2.bf16.msra.mxu0 0
    %1353 = vmatprep.subr.bf16.mxu0 0
    %1354 = vmatpush2.bf16.msra.mxu0 0
    %1355 = vmatprep.subr.bf16.mxu0 0
    %1356 = vmatpush2.bf16.msra.mxu0 0
    %1357 = vmatprep.subr.bf16.mxu0 0
    %1358 = vmatpush2.bf16.msra.mxu0 0
    %1359 = vmatprep.subr.bf16.mxu0 0
    %1360 = vmatpush2.bf16.msra.mxu0 0
    %1361 = vmatprep.subr.bf16.mxu0 0
    %1362 = vmatpush2.bf16.msra.mxu0 0
    %1363 = vmatprep.subr.bf16.mxu0 0
    %1364 = vmatpush2.bf16.msra.mxu0 0
    %1365 = vmatprep.mubr.bf16.mxu0 0
    %1366 = vmatmul.mubr.bf16.gmra.mxu0 %v1331
    %v1367 = vpop.f32.mrf.mxu0
    %v1368 = vadd.f32 %v1303, %v1367
    %v1369 = vpop.f32.mrf.mxu0
    %v1370 = vadd.f32 %v1307, %v1369
    %v1371 = vpop.f32.mrf.mxu0
    %v1372 = vadd.f32 %v1303, %v1371
    %v1373 = vpop.f32.mrf.mxu0
    %v1374 = vadd.f32 %v1307, %v1373
    %1375 = vdwg.mxu0
    %v1376 = vmul.f32 %v1370, 0.5
    %v1377 = vmul.f32 %v1374, 0.5
    %v1378 = vmul.f32 %v1370, 0.70710677
    %v1379 = vmul.f32 %v1374, 0.70710677
    %v1380 = vand.u32 2147483647, %v1378
    %v1381 = vand.u32 2147483647, %v1379
    %v1382 = vmul.f32 %v1380, 0.3275911
    %v1383 = vmul.f32 %v1381, 0.3275911
    %v1384 = vadd.f32 %v1382, 1.0
    %v1385 = vadd.f32 %v1383, 1.0
    %v1386 = vrcp.pop %v1384
    %v1387 = vmul.f32 1.0, %v1386
    %v1388 = vrcp.pop %v1385
    %v1389 = vmul.f32 1.0, %v1388
    %v1390 = vmul.f32 %v1387, 1.0614054
    %v1391 = vmul.f32 %v1389, 1.0614054
    %v1392 = vsub.f32 %v1390, 1.4531521
    %v1393 = vsub.f32 %v1391, 1.4531521
    %v1394 = vmul.f32 %v1392, %v1387
    %v1395 = vmul.f32 %v1393, %v1389
    %v1396 = vadd.f32 %v1394, 1.4214138
    %v1397 = vadd.f32 %v1395, 1.4214138
    %v1398 = vmul.f32 %v1396, %v1387
    %v1399 = vmul.f32 %v1397, %v1389
    %v1400 = vsub.f32 %v1398, 0.28449672
    %v1401 = vsub.f32 %v1399, 0.28449672
    %v1402 = vmul.f32 %v1400, %v1387
    %v1403 = vmul.f32 %v1401, %v1389
    %v1404 = vadd.f32 %v1402, 0.2548296
    %v1405 = vadd.f32 %v1403, 0.2548296
    %v1406 = vmul.f32 %v1404, %v1387
    %v1407 = vmul.f32 %v1405, %v1389
    %v1408 = vsub.f32 0.0, %v1380
    %v1409 = vsub.f32 0.0, %v1381
    %v1410 = vmul.f32 %v1408, %v1380
    %v1411 = vmul.f32 %v1409, %v1381
    %v1412 = vmul.f32 %v1410, 1.442695
    %v1413 = vpow.pop %v1412
    %v1414 = vmul.f32 %v1411, 1.442695
    %v1415 = vpow.pop %v1414
    %v1416 = vmul.f32 %v1406, %v1413
    %v1417 = vmul.f32 %v1407, %v1415
    %v1418 = vsub.f32 1.0, %v1416
    %v1419 = vsub.f32 1.0, %v1417
    %vm1420 = vcmp.ge.f32.partialorder %v1378, 0.0
    %vm1421 = vcmp.ge.f32.partialorder %v1379, 0.0
    %v1422 = vsub.f32 0.0, %v1418
    %v1423 = vsub.f32 0.0, %v1419
    %v1424 = vsel %vm1420, %v1418, %v1422
    %v1425 = vsel %vm1421, %v1419, %v1423
    %v1426 = vadd.f32 %v1424, 1.0
    %v1427 = vadd.f32 %v1425, 1.0
    %v1428 = vmul.f32 %v1376, %v1426
    %v1429 = vmul.f32 %v1377, %v1427
    %v1430 = vmul.f32 %v1368, %v1428
    %v1431 = vmul.f32 %v1372, %v1429
    %v1432 = vpack.c.bf16 %v1431, %v1430
    %v1449 = vunpack.c.l.b16 %v76
    %v1450 = vunpack.c.l.b16 %v77
    %v1451 = vunpack.c.l.b16 %v78
    %v1452 = vunpack.c.l.b16 %v79
    %v1453 = vunpack.c.l.b16 %v80
    %v1454 = vunpack.c.l.b16 %v81
    %v1455 = vunpack.c.l.b16 %v82
    %v1456 = vunpack.c.l.b16 %v83
    %v1457 = vunpack.c.l.b16 %v84
    %v1458 = vunpack.c.l.b16 %v85
    %v1459 = vunpack.c.l.b16 %v86
    %v1460 = vunpack.c.l.b16 %v87
    %v1461 = vunpack.c.l.b16 %v88
    %v1462 = vunpack.c.l.b16 %v89
    %v1463 = vunpack.c.l.b16 %v90
    %v1464 = vunpack.c.l.b16 %v91
    %v1465 = vpack.c.b16 %v1450, %v1449
    %v1466 = vpack.c.b16 %v1452, %v1451
    %v1467 = vpack.c.b16 %v1454, %v1453
    %v1468 = vpack.c.b16 %v1456, %v1455
    %v1469 = vpack.c.b16 %v1458, %v1457
    %v1470 = vpack.c.b16 %v1460, %v1459
    %v1471 = vpack.c.b16 %v1462, %v1461
    %v1472 = vpack.c.b16 %v1464, %v1463
    %1481 = vmatprep.subr.bf16.mxu0 0
    %1482 = vmatpush1.bf16.msra.mxu0 %v1472
    %1483 = vmatprep.subr.bf16.mxu0 0
    %1484 = vmatpush1.bf16.msra.mxu0 %v1471
    %1485 = vmatprep.subr.bf16.mxu0 0
    %1486 = vmatpush1.bf16.msra.mxu0 %v1470
    %1487 = vmatprep.subr.bf16.mxu0 0
    %1488 = vmatpush1.bf16.msra.mxu0 %v1469
    %1489 = vmatprep.subr.bf16.mxu0 0
    %1490 = vmatpush1.bf16.msra.mxu0 %v1468
    %1491 = vmatprep.subr.bf16.mxu0 0
    %1492 = vmatpush1.bf16.msra.mxu0 %v1467
    %1493 = vmatprep.subr.bf16.mxu0 0
    %1494 = vmatpush1.bf16.msra.mxu0 %v1466
    %1495 = vmatprep.subr.bf16.mxu0 0
    %1496 = vmatpush1.bf16.msra.mxu0 %v1465
    %1497 = vmatprep.subr.bf16.mxu0 0
    %1498 = vmatpush2.bf16.msra.mxu0 0
    %1499 = vmatprep.subr.bf16.mxu0 0
    %1500 = vmatpush2.bf16.msra.mxu0 0
    %1501 = vmatprep.subr.bf16.mxu0 0
    %1502 = vmatpush2.bf16.msra.mxu0 0
    %1503 = vmatprep.subr.bf16.mxu0 0
    %1504 = vmatpush2.bf16.msra.mxu0 0
    %1505 = vmatprep.subr.bf16.mxu0 0
    %1506 = vmatpush2.bf16.msra.mxu0 0
    %1507 = vmatprep.subr.bf16.mxu0 0
    %1508 = vmatpush2.bf16.msra.mxu0 0
    %1509 = vmatprep.subr.bf16.mxu0 0
    %1510 = vmatpush2.bf16.msra.mxu0 0
    %1511 = vmatprep.subr.bf16.mxu0 0
    %1512 = vmatpush2.bf16.msra.mxu0 0
    %1513 = vmatprep.mubr.bf16.mxu0 0
    %1514 = vmatmul.mubr.bf16.gmra.mxu0 %v1432
    %v1515 = vpop.f32.mrf.mxu0
    %v1516 = vadd.f32 %v109, %v1515
    %v1517 = vpop.f32.mrf.mxu0
    %v1518 = vpop.f32.mrf.mxu0
    %v1519 = vadd.f32 %v109, %v1518
    %v1520 = vpop.f32.mrf.mxu0
    %1521 = vdwg.mxu0
    %v1522 = vadd.f32 %v1266, %v1516
    %v1523 = vadd.f32 %v1267, %v1519
    %v1524 = vpack.c.bf16 %v1523, %v1522
    %v1529 = vunpack.c.l.b16 %v92
    %v1530 = vunpack.c.l.b16 %v93
    %v1531 = vunpack.c.l.b16 %v94
    %v1532 = vunpack.c.l.b16 %v95
    %v1533 = vpack.c.b16 %v1530, %v1529
    %v1534 = vpack.c.b16 %v1532, %v1531
    %v1538 = vsel %vm220, %v1524, 0
    %1540 = vmatprep.subr.bf16.mxu0 0
    %1541 = vmatpush1.bf16.msra.mxu0 0
    %1542 = vmatprep.subr.bf16.mxu0 0
    %1543 = vmatpush1.bf16.msra.mxu0 0
    %1544 = vmatprep.subr.bf16.mxu0 0
    %1545 = vmatpush1.bf16.msra.mxu0 0
    %1546 = vmatprep.subr.bf16.mxu0 0
    %1547 = vmatpush1.bf16.msra.mxu0 0
    %1548 = vmatprep.subr.bf16.mxu0 0
    %1549 = vmatpush1.bf16.msra.mxu0 0
    %1550 = vmatprep.subr.bf16.mxu0 0
    %1551 = vmatpush1.bf16.msra.mxu0 0
    %1552 = vmatprep.subr.bf16.mxu0 0
    %1553 = vmatpush1.bf16.msra.mxu0 %v1534
    %1554 = vmatprep.subr.bf16.mxu0 0
    %1555 = vmatpush1.bf16.msra.mxu0 %v1533
    %1556 = vmatprep.subr.bf16.mxu0 0
    %1557 = vmatpush2.bf16.msra.mxu0 0
    %1558 = vmatprep.subr.bf16.mxu0 0
    %1559 = vmatpush2.bf16.msra.mxu0 0
    %1560 = vmatprep.subr.bf16.mxu0 0
    %1561 = vmatpush2.bf16.msra.mxu0 0
    %1562 = vmatprep.subr.bf16.mxu0 0
    %1563 = vmatpush2.bf16.msra.mxu0 0
    %1564 = vmatprep.subr.bf16.mxu0 0
    %1565 = vmatpush2.bf16.msra.mxu0 0
    %1566 = vmatprep.subr.bf16.mxu0 0
    %1567 = vmatpush2.bf16.msra.mxu0 0
    %1568 = vmatprep.subr.bf16.mxu0 0
    %1569 = vmatpush2.bf16.msra.mxu0 0
    %1570 = vmatprep.subr.bf16.mxu0 0
    %1571 = vmatpush2.bf16.msra.mxu0 0
    %1572 = vmatprep.mubr.bf16.mxu0 0
    %1573 = vmatmul.mubr.bf16.gmra.mxu0 %v1538
    %v1574 = vpop.f32.mrf.mxu0
    %v1575 = vadd.f32 %v110, %v1574
    %v1576 = vpop.f32.mrf.mxu0
    %v1577 = vpop.f32.mrf.mxu0
    %v1578 = vadd.f32 %v110, %v1577
    %v1579 = vpop.f32.mrf.mxu0
    %1580 = vdwg.mxu0
    %1581 = vst.msk [vmem:[#allocation7] sm:$0xff] %vm220, %v1575
    %1582 = vst.msk [vmem:[#allocation7 + $0x8] sm:$0xff] %vm220, %v1578
    // Predicated region
    $region22: #{retrieval_token_transformer.1} parent=1 // pred_check
      _
    $region23: #{retrieval_token_transformer.1} parent=1 // pred_check_branch
      %1584 = sbr.rel (0) target = $region25
    $region24: #{retrieval_token_transformer.1} parent=1 // pred_region
      %s1586 = ssub.s32 256, 256
      %1587 = vsyncadd [#allocation4], %s1586
      %s1588 = sshll.u32 [#allocation7], 4
      %s1589 = int_to_ptr.vmem [resolvable:$true] %s1588
      %1594 = dma.vmem_to_hbm [thread:$0]  %s1589, 256, %s3, [#allocation4], 128, 128, 8
    $region25: #{retrieval_token_transformer.1} parent=1 // pred_fallthru
      _
    // Predicated region
    $region26: #{retrieval_token_transformer.1} parent=1 // pred_check
      _
    $region27: #{retrieval_token_transformer.1} parent=1 // pred_check_branch
      %1596 = sbr.rel (0) target = $region29
    $region28: #{retrieval_token_transformer.1} parent=1 // pred_region
      %1597 = dma.done [#allocation4], 256
    $region29: #{retrieval_token_transformer.1} parent=1 // pred_fallthru
      _
    %1598 = vsyncpa [#allocation3], 1
    %1599 = vsyncpa [#allocation6], 1
    %1600 = vsyncpa [#allocation4], 1

</llo_original>
